<compile_context>
chip_gen: v7x
topology: tpu7x:2x2x1
jax: 0.10.0
libtpu: 0.0.40
codegen_flags: <defaults>
</compile_context>

<pallas_src>
import functools

import jax
import jax.numpy as jnp
from jax.experimental import pallas as pl
from jax.experimental.pallas import tpu as pltpu

LN_EPS = 1e-5  # torch.nn.LayerNorm default eps


def _layer_norm(x, gamma, beta):
    # Two-pass mean / variance (matches torch; avoids E[x^2]-E[x]^2 cancellation).
    mean = jnp.mean(x, axis=-1, keepdims=True)
    centered = x - mean
    var = jnp.mean(centered * centered, axis=-1, keepdims=True)
    return centered * jax.lax.rsqrt(var + LN_EPS) * gamma + beta


# -----------------------------------------------------------------------------
# Fused forward kernel: all GCN layers + all prediction heads + ensemble sum.
#
#   x_ref   : (B_BLK, N, D)                        f32
#   adj_ref : (1, B_BLK*N, B_BLK*N)  if merged_adj (block-diagonal, matmul dtype)
#             (B_BLK, N, N)          otherwise     (matmul dtype)
#   wg_ref  : (n_layers, D, D)    GCN ctx_layer weights, pre-transposed, mm dtype
#   gg_ref  : (n_layers, 1, D)    GCN LayerNorm gamma                       f32
#   bg_ref  : (n_layers, 1, D)    GCN LayerNorm beta                        f32
#   wp_ref  : (n_heads, D, Dout)  prediction Linear weights, pre-T, mm dtype
#   bp_ref  : (n_heads, 1, Dout)  prediction Linear bias                    f32
#   gp_ref  : (n_heads, 1, Dout)  prediction LayerNorm gamma                f32
#   bp2_ref : (n_heads, 1, Dout)  prediction LayerNorm beta                 f32
#   o_ref   : (B_BLK, N, Dout)
# -----------------------------------------------------------------------------
def ensemble_gcn_kernel(x_ref, adj_ref, wg_ref, gg_ref, bg_ref,
                        wp_ref, bp_ref, gp_ref, bp2_ref, o_ref,
                        *, n_layers, matmul_dtype, merged_adj):
    bb, n, d = x_ref.shape
    dout = o_ref.shape[-1]
    bn = bb * n

    # Residual / LayerNorm / ensemble accumulation stay f32.
    x = x_ref[...].astype(jnp.float32).reshape(bn, d)

    def predict(h_mm, j):
        # ReLU(LayerNorm(h @ Wp + b)); Wp already stored as (D, Dout).
        y = jnp.dot(h_mm, wp_ref[j], preferred_element_type=jnp.float32)
        y = y + bp_ref[j]
        y = _layer_norm(y, gp_ref[j], bp2_ref[j])
        return jnp.maximum(y, 0.0)

    def aggregate(ctx_mm):
        # ctx_mm: (B*N, D) in matmul dtype.
        if merged_adj:
            # Single lane-dense (BN, BN) x (BN, D) MXU matmul (block-diag adj).
            return jnp.dot(adj_ref[0], ctx_mm, preferred_element_type=jnp.float32)
        adj = adj_ref[...]                                     # (B, N, N)
        agg = jnp.einsum('bij,bjd->bid', adj, ctx_mm.reshape(bb, n, d),
                         preferred_element_type=jnp.float32)   # (B, N, D)
        return agg.reshape(bn, d)

    h = x
    h_mm = h.astype(matmul_dtype)      # cast once; reused by predict + next ctx
    acc = predict(h_mm, 0)             # head 0 on the raw input

    # Static unroll: n_layers is small here (see TODO at top for large counts).
    for i in range(n_layers):
        ctx = jnp.dot(h_mm, wg_ref[i], preferred_element_type=jnp.float32)
        agg = aggregate(ctx.astype(matmul_dtype))
        h = _layer_norm(h + agg, gg_ref[i], bg_ref[i])
        h_mm = h.astype(matmul_dtype)
        acc = acc + predict(h_mm, i + 1)           # ensemble sum in-kernel

    o_ref[...] = acc.reshape(bb, n, dout).astype(o_ref.dtype)


# -----------------------------------------------------------------------------
# Wrapper
# -----------------------------------------------------------------------------
def _pick_b_blk(bs, n, row_target):
    """Smallest divisor of bs whose merged row count b*n reaches row_target.

    Falls back to one big step (prefer one full step over several starved
    ones).  Always a divisor, so bs % b_blk == 0 for any bs (incl. odd).
    """
    for b in range(1, bs + 1):
        if bs % b == 0 and b * n >= row_target:
            return b
    return bs


def ensemble_gcn_forward(params, x, adj, *, b_blk=None, row_target=256,
                         matmul_dtype=jnp.bfloat16, merge_small_n=True):
    """Fused EnsembleGCN forward (inference mode).

    matmul_dtype=jnp.bfloat16 (default) uses the fast bf16 MXU path with f32
    accumulation; pass jnp.float32 for torch-exact parity.
    """
    bs, n, d = x.shape
    wg, gg, bg = params["gcn_w"], params["gcn_gamma"], params["gcn_beta"]
    wp, bp, gp, betap = (params["pred_w"], params["pred_b"],
                         params["pred_gamma"], params["pred_beta"])
    n_layers = wg.shape[0]
    n_heads, _, dout = wp.shape

    if b_blk is None:
        b_blk = _pick_b_blk(bs, n, row_target)
    assert bs % b_blk == 0, "b_blk must divide the batch size"
    steps = bs // b_blk
    bn = b_blk * n

    # Pre-cast matmul operands ONCE here (no per-call transposes/casts in the
    # kernel; halves HBM traffic + VMEM for adj on the bf16 path).
    wg_mm = wg.astype(matmul_dtype)
    wp_mm = wp.astype(matmul_dtype)

    # Small-graph path: merge the batch into one block-diagonal adjacency per
    # grid step -> single large, lane-dense aggregation matmul in the kernel.
    merged_adj = merge_small_n and (n < 128) and (bn <= 1024)
    if merged_adj:
        eye = jnp.eye(b_blk, dtype=matmul_dtype)
        adj_in = jnp.einsum(
            'sbij,bc->sbicj',
            adj.reshape(steps, b_blk, n, n).astype(matmul_dtype),
            eye).reshape(steps, bn, bn)
        adj_spec = pl.BlockSpec((1, bn, bn), lambda s: (s, 0, 0))
        adj_block_bytes = bn * bn * jnp.dtype(matmul_dtype).itemsize
    else:
        adj_in = adj.astype(matmul_dtype)
        adj_spec = pl.BlockSpec((b_blk, n, n), lambda s: (s, 0, 0))
        adj_block_bytes = b_blk * n * n * jnp.dtype(matmul_dtype).itemsize

    # Explicit scoped-VMEM budget from actual block footprints (+ headroom),
    # clamped so it is valid on v7x (64 MiB per TC).
    f32b = 4
    mmb = jnp.dtype(matmul_dtype).itemsize
    io_bytes = 2 * (b_blk * n * d * x.dtype.itemsize      # x (double-buffered)
                    + adj_block_bytes                      # adj
                    + b_blk * n * dout * x.dtype.itemsize)  # out
    w_bytes = 2 * ((n_layers * d * d + n_heads * d * dout) * mmb
                   + (2 * n_layers * d + 3 * n_heads * dout) * f32b)
    work_bytes = 10 * bn * max(d, dout) * f32b + adj_block_bytes
    vmem_limit = int(min(max(io_bytes + w_bytes + work_bytes + (8 << 20),
                             32 << 20), 64 << 20))

    kernel = functools.partial(ensemble_gcn_kernel, n_layers=n_layers,
                               matmul_dtype=matmul_dtype,
                               merged_adj=merged_adj)
    return pl.pallas_call(
        kernel,
        out_shape=jax.ShapeDtypeStruct((bs, n, dout), x.dtype),
        grid=(steps,),
        in_specs=[
            pl.BlockSpec((b_blk, n, d), lambda s: (s, 0, 0)),
            adj_spec,
            # weights / norm params: resident, same block every grid step
            pl.BlockSpec((n_layers, d, d), lambda s: (0, 0, 0)),
            pl.BlockSpec((n_layers, 1, d), lambda s: (0, 0, 0)),
            pl.BlockSpec((n_layers, 1, d), lambda s: (0, 0, 0)),
            pl.BlockSpec((n_heads, d, dout), lambda s: (0, 0, 0)),
            pl.BlockSpec((n_heads, 1, dout), lambda s: (0, 0, 0)),
            pl.BlockSpec((n_heads, 1, dout), lambda s: (0, 0, 0)),
            pl.BlockSpec((n_heads, 1, dout), lambda s: (0, 0, 0)),
        ],
        out_specs=pl.BlockSpec((b_blk, n, dout), lambda s: (s, 0, 0)),
        compiler_params=pltpu.CompilerParams(
            dimension_semantics=("parallel",),
            vmem_limit_bytes=vmem_limit),
    )(x, adj_in, wg_mm, gg, bg, wp_mm, bp, gp, betap)


# -----------------------------------------------------------------------------
# Parameter init (deterministic, mirrors module __init__), pre-transposed and
# stacked once so the forward never reshapes / transposes weights.
# -----------------------------------------------------------------------------
def init_params(key, input_dim, hidden_dims, n_layers):
    gcn_dims = [input_dim if i == 0 else hidden_dims[i - 1]
                for i in range(n_layers)]
    pred_dims = [(input_dim if i == 0 else hidden_dims[i - 1], hidden_dims[i])
                 for i in range(n_layers)]
    pred_dims.append((hidden_dims[-2], hidden_dims[-1]))

    # Stacking (and the ensemble sum) requires uniform dims; the original
    # module's shape consistency already forces this for n_layers >= 2.
    assert all(dd == gcn_dims[0] for dd in gcn_dims)
    assert all(di == pred_dims[0][0] for di, _ in pred_dims)
    assert all(do == pred_dims[0][1] for _, do in pred_dims)

    d = gcn_dims[0]
    din, dout = pred_dims[0]

    gcn_w, gcn_g, gcn_b = [], [], []
    for _ in range(n_layers):
        key, k = jax.random.split(key)
        # kaiming_normal_: std = sqrt(2 / fan_in); stored pre-transposed (in, out)
        gcn_w.append(jax.random.normal(k, (d, d), jnp.float32)
                     * jnp.sqrt(2.0 / d))
        gcn_g.append(jnp.ones((1, d), jnp.float32))
        gcn_b.append(jnp.zeros((1, d), jnp.float32))

    pred_w, pred_b, pred_g, pred_beta = [], [], [], []
    for _ in range(len(pred_dims)):
        key, kw, kb = jax.random.split(key, 3)
        bound = 1.0 / float(din) ** 0.5
        # torch Linear default init; stored pre-transposed (in, out)
        pred_w.append(jax.random.uniform(kw, (din, dout), jnp.float32,
                                         -bound, bound))
        pred_b.append(jax.random.uniform(kb, (1, dout), jnp.float32,
                                         -bound, bound))
        pred_g.append(jnp.ones((1, dout), jnp.float32))
        pred_beta.append(jnp.zeros((1, dout), jnp.float32))

    return {
        "gcn_w": jnp.stack(gcn_w),        # (n_layers, D, D)
        "gcn_gamma": jnp.stack(gcn_g),    # (n_layers, 1, D)
        "gcn_beta": jnp.stack(gcn_b),     # (n_layers, 1, D)
        "pred_w": jnp.stack(pred_w),      # (n_heads, D, Dout)
        "pred_b": jnp.stack(pred_b),      # (n_heads, 1, Dout)
        "pred_gamma": jnp.stack(pred_g),  # (n_heads, 1, Dout)
        "pred_beta": jnp.stack(pred_beta),
    }


# -----------------------------------------------------------------------------
# Pure-JAX reference (for correctness check only)
# -----------------------------------------------------------------------------
def ensemble_gcn_reference(params, x, adj):
    def ln(v, g, b):
        m = v.mean(-1, keepdims=True)
        var = ((v - m) ** 2).mean(-1, keepdims=True)
        return (v - m) / jnp.sqrt(var + LN_EPS) * g + b

    wg, gg, bg = params["gcn_w"], params["gcn_gamma"], params["gcn_beta"]
    wp, bp, gp, betap = (params["pred_w"], params["pred_b"],
                         params["pred_gamma"], params["pred_beta"])
    hidden_states = [x]
    h = x
    for i in range(wg.shape[0]):
        ctx = jnp.einsum('bij,bjd->bid', adj, h @ wg[i])
        h = ln(h + ctx, gg[i, 0], bg[i, 0])
        hidden_states.append(h)
    out = 0.0
    for j, hcur in enumerate(hidden_states):
        y = hcur @ wp[j] + bp[j, 0]
        out = out + jnp.maximum(ln(y, gp[j, 0], betap[j, 0]), 0.0)
    return out


if __name__ == "__main__":
    key = jax.random.PRNGKey(0)

    # Small but lane-dense demo shapes: D = Dout = 128; bs*N = 128 merged rows.
    bs, num_nodes, dim = 8, 16, 128
    n_layers = 2
    hidden_dims = [dim, dim]   # module shape-consistency requires these == dim

    key, kx, ka, kp = jax.random.split(key, 4)
    x = jax.random.normal(kx, (bs, num_nodes, dim), jnp.float32)
    adj = jax.random.uniform(ka, (bs, num_nodes, num_nodes), jnp.float32)
    adj = adj / jnp.sum(adj, axis=-1, keepdims=True)   # row-normalized adjacency

    params = init_params(kp, dim, hidden_dims, n_layers)
    ref = ensemble_gcn_reference(params, x, adj)

    # 1) f32 path (torch-exact parity), block-diagonal merged aggregation.
    out_f32 = ensemble_gcn_forward(params, x, adj, matmul_dtype=jnp.float32)
    jax.block_until_ready(out_f32)
    assert out_f32.shape == (bs, num_nodes, hidden_dims[-1])
    assert jnp.allclose(out_f32, ref, atol=2e-4, rtol=2e-4), \
        float(jnp.max(jnp.abs(out_f32 - ref)))

    # 2) f32 path with the batched (per-graph) aggregation fallback.
    out_bat = ensemble_gcn_forward(params, x, adj, matmul_dtype=jnp.float32,
                                   b_blk=4, merge_small_n=False)
    jax.block_until_ready(out_bat)
    assert jnp.allclose(out_bat, ref, atol=2e-4, rtol=2e-4), \
        float(jnp.max(jnp.abs(out_bat - ref)))

    # 3) Default fast path: bf16 MXU, f32 accumulation (looser tolerance).
    out_bf16 = ensemble_gcn_forward(params, x, adj)
    jax.block_until_ready(out_bf16)
    assert jnp.allclose(out_bf16, ref, atol=1e-1, rtol=5e-2), \
        float(jnp.max(jnp.abs(out_bf16 - ref)))

    print("KERNEL_OK")
</pallas_src>

<mosaic_0001>
module attributes {stable_mosaic.version = 11 : i64} {
  func.func @ensemble_gcn_kernel(%arg0: i32, %arg1: memref<8x16x128xf32, #tpu.memory_space<vmem>>, %arg2: memref<1x128x128xf32, #tpu.memory_space<vmem>>, %arg3: memref<2x128x128xf32, #tpu.memory_space<vmem>>, %arg4: memref<2x1x128xf32, #tpu.memory_space<vmem>>, %arg5: memref<2x1x128xf32, #tpu.memory_space<vmem>>, %arg6: memref<3x128x128xf32, #tpu.memory_space<vmem>>, %arg7: memref<3x1x128xf32, #tpu.memory_space<vmem>>, %arg8: memref<3x1x128xf32, #tpu.memory_space<vmem>>, %arg9: memref<3x1x128xf32, #tpu.memory_space<vmem>>, %arg10: memref<8x16x128xf32, #tpu.memory_space<vmem>>) attributes {dimension_semantics = [#tpu.dimension_semantics<parallel>], iteration_bounds = array<i64: 1>, scalar_prefetch = 0 : i64, scratch_operands = 0 : i64, tpu.core_type = #tpu.core_type<tc>, window_params = [{transform_indices = @transform_0, window_bounds = array<i64: 8, 16, 128>}, {transform_indices = @transform_1, window_bounds = array<i64: 1, 128, 128>}, {pipeline_mode = #tpu.pipeline_mode<synchronous>, transform_indices = @transform_2, window_bounds = array<i64: 2, 128, 128>}, {pipeline_mode = #tpu.pipeline_mode<synchronous>, transform_indices = @transform_3, window_bounds = array<i64: 2, 1, 128>}, {pipeline_mode = #tpu.pipeline_mode<synchronous>, transform_indices = @transform_4, window_bounds = array<i64: 2, 1, 128>}, {pipeline_mode = #tpu.pipeline_mode<synchronous>, transform_indices = @transform_5, window_bounds = array<i64: 3, 128, 128>}, {pipeline_mode = #tpu.pipeline_mode<synchronous>, transform_indices = @transform_6, window_bounds = array<i64: 3, 1, 128>}, {pipeline_mode = #tpu.pipeline_mode<synchronous>, transform_indices = @transform_7, window_bounds = array<i64: 3, 1, 128>}, {pipeline_mode = #tpu.pipeline_mode<synchronous>, transform_indices = @transform_8, window_bounds = array<i64: 3, 1, 128>}, {transform_indices = @transform_9, window_bounds = array<i64: 8, 16, 128>}]} {
    %c0 = arith.constant 0 : index
    %c0_0 = arith.constant 0 : index
    %c0_1 = arith.constant 0 : index
    %0 = vector.load %arg1[%c0, %c0_0, %c0_1] : memref<8x16x128xf32, #tpu.memory_space<vmem>>, vector<8x16x128xf32>
    %1 = vector.shape_cast %0 : vector<8x16x128xf32> to vector<128x128xf32>
    %c0_2 = arith.constant 0 : index
    %c0_3 = arith.constant 0 : index
    %c0_4 = arith.constant 0 : index
    %2 = vector.load %arg6[%c0_2, %c0_3, %c0_4] : memref<3x128x128xf32, #tpu.memory_space<vmem>>, vector<1x128x128xf32>
    %3 = vector.shape_cast %2 : vector<1x128x128xf32> to vector<128x128xf32>
    %cst = arith.constant dense<0.000000e+00> : vector<128x128xf32>
    %4 = tpu.matmul %1, %3, %cst {dimension_numbers = #tpu.dot_dimension_numbers<[1], [0], [0], [1], [0, 0, 1, 1], [], []>} : vector<128x128xf32>, vector<128x128xf32>, vector<128x128xf32> -> vector<128x128xf32>
    %c0_5 = arith.constant 0 : index
    %c0_6 = arith.constant 0 : index
    %c0_7 = arith.constant 0 : index
    %5 = vector.load %arg7[%c0_5, %c0_6, %c0_7] : memref<3x1x128xf32, #tpu.memory_space<vmem>>, vector<1x1x128xf32>
    %6 = vector.shape_cast %5 : vector<1x1x128xf32> to vector<1x128xf32>
    %7 = vector.broadcast %6 : vector<1x128xf32> to vector<128x128xf32>
    %8 = arith.addf %4, %7 : vector<128x128xf32>
    %c0_8 = arith.constant 0 : index
    %c0_9 = arith.constant 0 : index
    %c0_10 = arith.constant 0 : index
    %9 = vector.load %arg8[%c0_8, %c0_9, %c0_10] : memref<3x1x128xf32, #tpu.memory_space<vmem>>, vector<1x1x128xf32>
    %10 = vector.shape_cast %9 : vector<1x1x128xf32> to vector<1x128xf32>
    %c0_11 = arith.constant 0 : index
    %c0_12 = arith.constant 0 : index
    %c0_13 = arith.constant 0 : index
    %11 = vector.load %arg9[%c0_11, %c0_12, %c0_13] : memref<3x1x128xf32, #tpu.memory_space<vmem>>, vector<1x1x128xf32>
    %12 = vector.shape_cast %11 : vector<1x1x128xf32> to vector<1x128xf32>
    %cst_14 = arith.constant dense<0.000000e+00> : vector<128xf32>
    %13 = vector.multi_reduction <add>, %8, %cst_14 [1] : vector<128x128xf32> to vector<128xf32>
    %14 = vector.shape_cast %13 : vector<128xf32> to vector<128x1xf32>
    %cst_15 = arith.constant 1.280000e+02 : f32
    %15 = vector.broadcast %cst_15 : f32 to vector<128x1xf32>
    %16 = arith.divf %14, %15 : vector<128x1xf32>
    %17 = vector.broadcast %16 : vector<128x1xf32> to vector<128x128xf32>
    %18 = arith.subf %8, %17 : vector<128x128xf32>
    %19 = arith.mulf %18, %18 : vector<128x128xf32>
    %cst_16 = arith.constant dense<0.000000e+00> : vector<128xf32>
    %20 = vector.multi_reduction <add>, %19, %cst_16 [1] : vector<128x128xf32> to vector<128xf32>
    %21 = vector.shape_cast %20 : vector<128xf32> to vector<128x1xf32>
    %cst_17 = arith.constant 1.280000e+02 : f32
    %22 = vector.broadcast %cst_17 : f32 to vector<128x1xf32>
    %23 = arith.divf %21, %22 : vector<128x1xf32>
    %cst_18 = arith.constant 9.99999974E-6 : f32
    %24 = vector.broadcast %cst_18 : f32 to vector<128x1xf32>
    %25 = arith.addf %23, %24 : vector<128x1xf32>
    %26 = math.rsqrt %25 : vector<128x1xf32>
    %27 = vector.broadcast %26 : vector<128x1xf32> to vector<128x128xf32>
    %28 = arith.mulf %18, %27 : vector<128x128xf32>
    %29 = vector.broadcast %10 : vector<1x128xf32> to vector<128x128xf32>
    %30 = arith.mulf %28, %29 : vector<128x128xf32>
    %31 = vector.broadcast %12 : vector<1x128xf32> to vector<128x128xf32>
    %32 = arith.addf %30, %31 : vector<128x128xf32>
    %cst_19 = arith.constant 0.000000e+00 : f32
    %33 = vector.broadcast %cst_19 : f32 to vector<128x128xf32>
    %34 = arith.maximumf %32, %33 : vector<128x128xf32>
    %c0_20 = arith.constant 0 : index
    %c0_21 = arith.constant 0 : index
    %c0_22 = arith.constant 0 : index
    %35 = vector.load %arg3[%c0_20, %c0_21, %c0_22] : memref<2x128x128xf32, #tpu.memory_space<vmem>>, vector<1x128x128xf32>
    %36 = vector.shape_cast %35 : vector<1x128x128xf32> to vector<128x128xf32>
    %cst_23 = arith.constant dense<0.000000e+00> : vector<128x128xf32>
    %37 = tpu.matmul %1, %36, %cst_23 {dimension_numbers = #tpu.dot_dimension_numbers<[1], [0], [0], [1], [0, 0, 1, 1], [], []>} : vector<128x128xf32>, vector<128x128xf32>, vector<128x128xf32> -> vector<128x128xf32>
    %c0_24 = arith.constant 0 : index
    %c0_25 = arith.constant 0 : index
    %c0_26 = arith.constant 0 : index
    %38 = vector.load %arg2[%c0_24, %c0_25, %c0_26] : memref<1x128x128xf32, #tpu.memory_space<vmem>>, vector<1x128x128xf32>
    %39 = vector.shape_cast %38 : vector<1x128x128xf32> to vector<128x128xf32>
    %cst_27 = arith.constant dense<0.000000e+00> : vector<128x128xf32>
    %40 = tpu.matmul %39, %37, %cst_27 {dimension_numbers = #tpu.dot_dimension_numbers<[1], [0], [0], [1], [0, 0, 1, 1], [], []>} : vector<128x128xf32>, vector<128x128xf32>, vector<128x128xf32> -> vector<128x128xf32>
    %41 = arith.addf %1, %40 : vector<128x128xf32>
    %c0_28 = arith.constant 0 : index
    %c0_29 = arith.constant 0 : index
    %c0_30 = arith.constant 0 : index
    %42 = vector.load %arg4[%c0_28, %c0_29, %c0_30] : memref<2x1x128xf32, #tpu.memory_space<vmem>>, vector<1x1x128xf32>
    %43 = vector.shape_cast %42 : vector<1x1x128xf32> to vector<1x128xf32>
    %c0_31 = arith.constant 0 : index
    %c0_32 = arith.constant 0 : index
    %c0_33 = arith.constant 0 : index
    %44 = vector.load %arg5[%c0_31, %c0_32, %c0_33] : memref<2x1x128xf32, #tpu.memory_space<vmem>>, vector<1x1x128xf32>
    %45 = vector.shape_cast %44 : vector<1x1x128xf32> to vector<1x128xf32>
    %cst_34 = arith.constant dense<0.000000e+00> : vector<128xf32>
    %46 = vector.multi_reduction <add>, %41, %cst_34 [1] : vector<128x128xf32> to vector<128xf32>
    %47 = vector.shape_cast %46 : vector<128xf32> to vector<128x1xf32>
    %cst_35 = arith.constant 1.280000e+02 : f32
    %48 = vector.broadcast %cst_35 : f32 to vector<128x1xf32>
    %49 = arith.divf %47, %48 : vector<128x1xf32>
    %50 = vector.broadcast %49 : vector<128x1xf32> to vector<128x128xf32>
    %51 = arith.subf %41, %50 : vector<128x128xf32>
    %52 = arith.mulf %51, %51 : vector<128x128xf32>
    %cst_36 = arith.constant dense<0.000000e+00> : vector<128xf32>
    %53 = vector.multi_reduction <add>, %52, %cst_36 [1] : vector<128x128xf32> to vector<128xf32>
    %54 = vector.shape_cast %53 : vector<128xf32> to vector<128x1xf32>
    %cst_37 = arith.constant 1.280000e+02 : f32
    %55 = vector.broadcast %cst_37 : f32 to vector<128x1xf32>
    %56 = arith.divf %54, %55 : vector<128x1xf32>
    %cst_38 = arith.constant 9.99999974E-6 : f32
    %57 = vector.broadcast %cst_38 : f32 to vector<128x1xf32>
    %58 = arith.addf %56, %57 : vector<128x1xf32>
    %59 = math.rsqrt %58 : vector<128x1xf32>
    %60 = vector.broadcast %59 : vector<128x1xf32> to vector<128x128xf32>
    %61 = arith.mulf %51, %60 : vector<128x128xf32>
    %62 = vector.broadcast %43 : vector<1x128xf32> to vector<128x128xf32>
    %63 = arith.mulf %61, %62 : vector<128x128xf32>
    %64 = vector.broadcast %45 : vector<1x128xf32> to vector<128x128xf32>
    %65 = arith.addf %63, %64 : vector<128x128xf32>
    %c1 = arith.constant 1 : index
    %c0_39 = arith.constant 0 : index
    %c0_40 = arith.constant 0 : index
    %66 = vector.load %arg6[%c1, %c0_39, %c0_40] : memref<3x128x128xf32, #tpu.memory_space<vmem>>, vector<1x128x128xf32>
    %67 = vector.shape_cast %66 : vector<1x128x128xf32> to vector<128x128xf32>
    %cst_41 = arith.constant dense<0.000000e+00> : vector<128x128xf32>
    %68 = tpu.matmul %65, %67, %cst_41 {dimension_numbers = #tpu.dot_dimension_numbers<[1], [0], [0], [1], [0, 0, 1, 1], [], []>} : vector<128x128xf32>, vector<128x128xf32>, vector<128x128xf32> -> vector<128x128xf32>
    %c1_42 = arith.constant 1 : index
    %c0_43 = arith.constant 0 : index
    %c0_44 = arith.constant 0 : index
    %69 = vector.load %arg7[%c1_42, %c0_43, %c0_44] : memref<3x1x128xf32, #tpu.memory_space<vmem>>, vector<1x1x128xf32>
    %70 = vector.shape_cast %69 : vector<1x1x128xf32> to vector<1x128xf32>
    %71 = vector.broadcast %70 : vector<1x128xf32> to vector<128x128xf32>
    %72 = arith.addf %68, %71 : vector<128x128xf32>
    %c1_45 = arith.constant 1 : index
    %c0_46 = arith.constant 0 : index
    %c0_47 = arith.constant 0 : index
    %73 = vector.load %arg8[%c1_45, %c0_46, %c0_47] : memref<3x1x128xf32, #tpu.memory_space<vmem>>, vector<1x1x128xf32>
    %74 = vector.shape_cast %73 : vector<1x1x128xf32> to vector<1x128xf32>
    %c1_48 = arith.constant 1 : index
    %c0_49 = arith.constant 0 : index
    %c0_50 = arith.constant 0 : index
    %75 = vector.load %arg9[%c1_48, %c0_49, %c0_50] : memref<3x1x128xf32, #tpu.memory_space<vmem>>, vector<1x1x128xf32>
    %76 = vector.shape_cast %75 : vector<1x1x128xf32> to vector<1x128xf32>
    %cst_51 = arith.constant dense<0.000000e+00> : vector<128xf32>
    %77 = vector.multi_reduction <add>, %72, %cst_51 [1] : vector<128x128xf32> to vector<128xf32>
    %78 = vector.shape_cast %77 : vector<128xf32> to vector<128x1xf32>
    %cst_52 = arith.constant 1.280000e+02 : f32
    %79 = vector.broadcast %cst_52 : f32 to vector<128x1xf32>
    %80 = arith.divf %78, %79 : vector<128x1xf32>
    %81 = vector.broadcast %80 : vector<128x1xf32> to vector<128x128xf32>
    %82 = arith.subf %72, %81 : vector<128x128xf32>
    %83 = arith.mulf %82, %82 : vector<128x128xf32>
    %cst_53 = arith.constant dense<0.000000e+00> : vector<128xf32>
    %84 = vector.multi_reduction <add>, %83, %cst_53 [1] : vector<128x128xf32> to vector<128xf32>
    %85 = vector.shape_cast %84 : vector<128xf32> to vector<128x1xf32>
    %cst_54 = arith.constant 1.280000e+02 : f32
    %86 = vector.broadcast %cst_54 : f32 to vector<128x1xf32>
    %87 = arith.divf %85, %86 : vector<128x1xf32>
    %cst_55 = arith.constant 9.99999974E-6 : f32
    %88 = vector.broadcast %cst_55 : f32 to vector<128x1xf32>
    %89 = arith.addf %87, %88 : vector<128x1xf32>
    %90 = math.rsqrt %89 : vector<128x1xf32>
    %91 = vector.broadcast %90 : vector<128x1xf32> to vector<128x128xf32>
    %92 = arith.mulf %82, %91 : vector<128x128xf32>
    %93 = vector.broadcast %74 : vector<1x128xf32> to vector<128x128xf32>
    %94 = arith.mulf %92, %93 : vector<128x128xf32>
    %95 = vector.broadcast %76 : vector<1x128xf32> to vector<128x128xf32>
    %96 = arith.addf %94, %95 : vector<128x128xf32>
    %cst_56 = arith.constant 0.000000e+00 : f32
    %97 = vector.broadcast %cst_56 : f32 to vector<128x128xf32>
    %98 = arith.maximumf %96, %97 : vector<128x128xf32>
    %99 = arith.addf %34, %98 : vector<128x128xf32>
    %c1_57 = arith.constant 1 : index
    %c0_58 = arith.constant 0 : index
    %c0_59 = arith.constant 0 : index
    %100 = vector.load %arg3[%c1_57, %c0_58, %c0_59] : memref<2x128x128xf32, #tpu.memory_space<vmem>>, vector<1x128x128xf32>
    %101 = vector.shape_cast %100 : vector<1x128x128xf32> to vector<128x128xf32>
    %cst_60 = arith.constant dense<0.000000e+00> : vector<128x128xf32>
    %102 = tpu.matmul %65, %101, %cst_60 {dimension_numbers = #tpu.dot_dimension_numbers<[1], [0], [0], [1], [0, 0, 1, 1], [], []>} : vector<128x128xf32>, vector<128x128xf32>, vector<128x128xf32> -> vector<128x128xf32>
    %c0_61 = arith.constant 0 : index
    %c0_62 = arith.constant 0 : index
    %c0_63 = arith.constant 0 : index
    %103 = vector.load %arg2[%c0_61, %c0_62, %c0_63] : memref<1x128x128xf32, #tpu.memory_space<vmem>>, vector<1x128x128xf32>
    %104 = vector.shape_cast %103 : vector<1x128x128xf32> to vector<128x128xf32>
    %cst_64 = arith.constant dense<0.000000e+00> : vector<128x128xf32>
    %105 = tpu.matmul %104, %102, %cst_64 {dimension_numbers = #tpu.dot_dimension_numbers<[1], [0], [0], [1], [0, 0, 1, 1], [], []>} : vector<128x128xf32>, vector<128x128xf32>, vector<128x128xf32> -> vector<128x128xf32>
    %106 = arith.addf %65, %105 : vector<128x128xf32>
    %c1_65 = arith.constant 1 : index
    %c0_66 = arith.constant 0 : index
    %c0_67 = arith.constant 0 : index
    %107 = vector.load %arg4[%c1_65, %c0_66, %c0_67] : memref<2x1x128xf32, #tpu.memory_space<vmem>>, vector<1x1x128xf32>
    %108 = vector.shape_cast %107 : vector<1x1x128xf32> to vector<1x128xf32>
    %c1_68 = arith.constant 1 : index
    %c0_69 = arith.constant 0 : index
    %c0_70 = arith.constant 0 : index
    %109 = vector.load %arg5[%c1_68, %c0_69, %c0_70] : memref<2x1x128xf32, #tpu.memory_space<vmem>>, vector<1x1x128xf32>
    %110 = vector.shape_cast %109 : vector<1x1x128xf32> to vector<1x128xf32>
    %cst_71 = arith.constant dense<0.000000e+00> : vector<128xf32>
    %111 = vector.multi_reduction <add>, %106, %cst_71 [1] : vector<128x128xf32> to vector<128xf32>
    %112 = vector.shape_cast %111 : vector<128xf32> to vector<128x1xf32>
    %cst_72 = arith.constant 1.280000e+02 : f32
    %113 = vector.broadcast %cst_72 : f32 to vector<128x1xf32>
    %114 = arith.divf %112, %113 : vector<128x1xf32>
    %115 = vector.broadcast %114 : vector<128x1xf32> to vector<128x128xf32>
    %116 = arith.subf %106, %115 : vector<128x128xf32>
    %117 = arith.mulf %116, %116 : vector<128x128xf32>
    %cst_73 = arith.constant dense<0.000000e+00> : vector<128xf32>
    %118 = vector.multi_reduction <add>, %117, %cst_73 [1] : vector<128x128xf32> to vector<128xf32>
    %119 = vector.shape_cast %118 : vector<128xf32> to vector<128x1xf32>
    %cst_74 = arith.constant 1.280000e+02 : f32
    %120 = vector.broadcast %cst_74 : f32 to vector<128x1xf32>
    %121 = arith.divf %119, %120 : vector<128x1xf32>
    %cst_75 = arith.constant 9.99999974E-6 : f32
    %122 = vector.broadcast %cst_75 : f32 to vector<128x1xf32>
    %123 = arith.addf %121, %122 : vector<128x1xf32>
    %124 = math.rsqrt %123 : vector<128x1xf32>
    %125 = vector.broadcast %124 : vector<128x1xf32> to vector<128x128xf32>
    %126 = arith.mulf %116, %125 : vector<128x128xf32>
    %127 = vector.broadcast %108 : vector<1x128xf32> to vector<128x128xf32>
    %128 = arith.mulf %126, %127 : vector<128x128xf32>
    %129 = vector.broadcast %110 : vector<1x128xf32> to vector<128x128xf32>
    %130 = arith.addf %128, %129 : vector<128x128xf32>
    %c2 = arith.constant 2 : index
    %c0_76 = arith.constant 0 : index
    %c0_77 = arith.constant 0 : index
    %131 = vector.load %arg6[%c2, %c0_76, %c0_77] : memref<3x128x128xf32, #tpu.memory_space<vmem>>, vector<1x128x128xf32>
    %132 = vector.shape_cast %131 : vector<1x128x128xf32> to vector<128x128xf32>
    %cst_78 = arith.constant dense<0.000000e+00> : vector<128x128xf32>
    %133 = tpu.matmul %130, %132, %cst_78 {dimension_numbers = #tpu.dot_dimension_numbers<[1], [0], [0], [1], [0, 0, 1, 1], [], []>} : vector<128x128xf32>, vector<128x128xf32>, vector<128x128xf32> -> vector<128x128xf32>
    %c2_79 = arith.constant 2 : index
    %c0_80 = arith.constant 0 : index
    %c0_81 = arith.constant 0 : index
    %134 = vector.load %arg7[%c2_79, %c0_80, %c0_81] : memref<3x1x128xf32, #tpu.memory_space<vmem>>, vector<1x1x128xf32>
    %135 = vector.shape_cast %134 : vector<1x1x128xf32> to vector<1x128xf32>
    %136 = vector.broadcast %135 : vector<1x128xf32> to vector<128x128xf32>
    %137 = arith.addf %133, %136 : vector<128x128xf32>
    %c2_82 = arith.constant 2 : index
    %c0_83 = arith.constant 0 : index
    %c0_84 = arith.constant 0 : index
    %138 = vector.load %arg8[%c2_82, %c0_83, %c0_84] : memref<3x1x128xf32, #tpu.memory_space<vmem>>, vector<1x1x128xf32>
    %139 = vector.shape_cast %138 : vector<1x1x128xf32> to vector<1x128xf32>
    %c2_85 = arith.constant 2 : index
    %c0_86 = arith.constant 0 : index
    %c0_87 = arith.constant 0 : index
    %140 = vector.load %arg9[%c2_85, %c0_86, %c0_87] : memref<3x1x128xf32, #tpu.memory_space<vmem>>, vector<1x1x128xf32>
    %141 = vector.shape_cast %140 : vector<1x1x128xf32> to vector<1x128xf32>
    %cst_88 = arith.constant dense<0.000000e+00> : vector<128xf32>
    %142 = vector.multi_reduction <add>, %137, %cst_88 [1] : vector<128x128xf32> to vector<128xf32>
    %143 = vector.shape_cast %142 : vector<128xf32> to vector<128x1xf32>
    %cst_89 = arith.constant 1.280000e+02 : f32
    %144 = vector.broadcast %cst_89 : f32 to vector<128x1xf32>
    %145 = arith.divf %143, %144 : vector<128x1xf32>
    %146 = vector.broadcast %145 : vector<128x1xf32> to vector<128x128xf32>
    %147 = arith.subf %137, %146 : vector<128x128xf32>
    %148 = arith.mulf %147, %147 : vector<128x128xf32>
    %cst_90 = arith.constant dense<0.000000e+00> : vector<128xf32>
    %149 = vector.multi_reduction <add>, %148, %cst_90 [1] : vector<128x128xf32> to vector<128xf32>
    %150 = vector.shape_cast %149 : vector<128xf32> to vector<128x1xf32>
    %cst_91 = arith.constant 1.280000e+02 : f32
    %151 = vector.broadcast %cst_91 : f32 to vector<128x1xf32>
    %152 = arith.divf %150, %151 : vector<128x1xf32>
    %cst_92 = arith.constant 9.99999974E-6 : f32
    %153 = vector.broadcast %cst_92 : f32 to vector<128x1xf32>
    %154 = arith.addf %152, %153 : vector<128x1xf32>
    %155 = math.rsqrt %154 : vector<128x1xf32>
    %156 = vector.broadcast %155 : vector<128x1xf32> to vector<128x128xf32>
    %157 = arith.mulf %147, %156 : vector<128x128xf32>
    %158 = vector.broadcast %139 : vector<1x128xf32> to vector<128x128xf32>
    %159 = arith.mulf %157, %158 : vector<128x128xf32>
    %160 = vector.broadcast %141 : vector<1x128xf32> to vector<128x128xf32>
    %161 = arith.addf %159, %160 : vector<128x128xf32>
    %cst_93 = arith.constant 0.000000e+00 : f32
    %162 = vector.broadcast %cst_93 : f32 to vector<128x128xf32>
    %163 = arith.maximumf %161, %162 : vector<128x128xf32>
    %164 = arith.addf %99, %163 : vector<128x128xf32>
    %165 = vector.shape_cast %164 : vector<128x128xf32> to vector<8x16x128xf32>
    %c0_94 = arith.constant 0 : index
    %c0_95 = arith.constant 0 : index
    %c0_96 = arith.constant 0 : index
    %166 = vector.load %arg10[%c0_94, %c0_95, %c0_96] : memref<8x16x128xf32, #tpu.memory_space<vmem>>, vector<8x16x128xf32>
    tpu.vector_store %arg10[%c0_94, %c0_95, %c0_96], %165 {strides = array<i32>} : memref<8x16x128xf32, #tpu.memory_space<vmem>>, vector<8x16x128xf32>,
    return
  }
  func.func @transform_0(%arg0: i32) -> (i32, i32, i32) {
    %c0_i32 = arith.constant 0 : i32
    %c0_i32_0 = arith.constant 0 : i32
    %c0_i32_1 = arith.constant 0 : i32
    return %arg0, %c0_i32, %c0_i32_0 : i32, i32, i32
  }
  func.func @transform_1(%arg0: i32) -> (i32, i32, i32) {
    %c0_i32 = arith.constant 0 : i32
    %c0_i32_0 = arith.constant 0 : i32
    %c0_i32_1 = arith.constant 0 : i32
    return %arg0, %c0_i32, %c0_i32_0 : i32, i32, i32
  }
  func.func @transform_2(%arg0: i32) -> (i32, i32, i32) {
    %c0_i32 = arith.constant 0 : i32
    %c0_i32_0 = arith.constant 0 : i32
    %c0_i32_1 = arith.constant 0 : i32
    %c0_i32_2 = arith.constant 0 : i32
    return %c0_i32, %c0_i32_0, %c0_i32_1 : i32, i32, i32
  }
  func.func @transform_3(%arg0: i32) -> (i32, i32, i32) {
    %c0_i32 = arith.constant 0 : i32
    %c0_i32_0 = arith.constant 0 : i32
    %c0_i32_1 = arith.constant 0 : i32
    %c0_i32_2 = arith.constant 0 : i32
    return %c0_i32, %c0_i32_0, %c0_i32_1 : i32, i32, i32
  }
  func.func @transform_4(%arg0: i32) -> (i32, i32, i32) {
    %c0_i32 = arith.constant 0 : i32
    %c0_i32_0 = arith.constant 0 : i32
    %c0_i32_1 = arith.constant 0 : i32
    %c0_i32_2 = arith.constant 0 : i32
    return %c0_i32, %c0_i32_0, %c0_i32_1 : i32, i32, i32
  }
  func.func @transform_5(%arg0: i32) -> (i32, i32, i32) {
    %c0_i32 = arith.constant 0 : i32
    %c0_i32_0 = arith.constant 0 : i32
    %c0_i32_1 = arith.constant 0 : i32
    %c0_i32_2 = arith.constant 0 : i32
    return %c0_i32, %c0_i32_0, %c0_i32_1 : i32, i32, i32
  }
  func.func @transform_6(%arg0: i32) -> (i32, i32, i32) {
    %c0_i32 = arith.constant 0 : i32
    %c0_i32_0 = arith.constant 0 : i32
    %c0_i32_1 = arith.constant 0 : i32
    %c0_i32_2 = arith.constant 0 : i32
    return %c0_i32, %c0_i32_0, %c0_i32_1 : i32, i32, i32
  }
  func.func @transform_7(%arg0: i32) -> (i32, i32, i32) {
    %c0_i32 = arith.constant 0 : i32
    %c0_i32_0 = arith.constant 0 : i32
    %c0_i32_1 = arith.constant 0 : i32
    %c0_i32_2 = arith.constant 0 : i32
    return %c0_i32, %c0_i32_0, %c0_i32_1 : i32, i32, i32
  }
  func.func @transform_8(%arg0: i32) -> (i32, i32, i32) {
    %c0_i32 = arith.constant 0 : i32
    %c0_i32_0 = arith.constant 0 : i32
    %c0_i32_1 = arith.constant 0 : i32
    %c0_i32_2 = arith.constant 0 : i32
    return %c0_i32, %c0_i32_0, %c0_i32_1 : i32, i32, i32
  }
  func.func @transform_9(%arg0: i32) -> (i32, i32, i32) {
    %c0_i32 = arith.constant 0 : i32
    %c0_i32_0 = arith.constant 0 : i32
    %c0_i32_1 = arith.constant 0 : i32
    return %arg0, %c0_i32, %c0_i32_0 : i32, i32, i32
  }
}

</mosaic_0001>

<llo_original>
// kernel: tpu_custom_call.1
$region0: #{tpu_custom_call.1}
  #allocation0 [shape = 'u32[]', space=smem, size = 0x4, offset = 0x4, fixed_abs, tag = 'smem constant byte address 0x4 - core index']
  #allocation1 [shape = 'u32[144,128]{1,0:T(1,128)}', space=vmem, size = 0x12000, scoped, tag = 'internal scratch']
  %s0 = inlined_call_operand.hbm [shape: f32[8,16,128], index: 0, kind: input, shape index: {}]
  %s1 = inlined_call_operand.hbm [shape: f32[1,128,128], index: 1, kind: input, shape index: {}]
  %s2 = inlined_call_operand.hbm [shape: f32[2,128,128], index: 2, kind: input, shape index: {}]
  %s3 = inlined_call_operand.vmem [shape: f32[2,1,128], index: 3, kind: input, shape index: {}]
  %s4 = inlined_call_operand.vmem [shape: f32[2,1,128], index: 4, kind: input, shape index: {}]
  %s5 = inlined_call_operand.hbm [shape: f32[3,128,128], index: 5, kind: input, shape index: {}]
  %s6 = inlined_call_operand.vmem [shape: f32[3,1,128], index: 6, kind: input, shape index: {}]
  %s7 = inlined_call_operand.vmem [shape: f32[3,1,128], index: 7, kind: input, shape index: {}]
  %s8 = inlined_call_operand.vmem [shape: f32[3,1,128], index: 8, kind: input, shape index: {}]
  %s9 = inlined_call_operand.hbm [shape: f32[8,16,128], index: 9, kind: output, shape index: {}]
  %s10 = sld [smem:[#allocation0]]
  $region62: #{tpu_custom_call.1} parent=0
    _
  %s12 = ssub.s32 1, %s10
  %s13 = scalar_select 0, %s12, %s10
  $region1: #{tpu_custom_call.1} parent=0
    #allocation2 [shape = 'u8[65536]{0}', space=vmem, size = 0x10000, scoped, tag = 'input window, operand 0, single buffered']
    #allocation3 [shape = 's32[1]{0}', space=sflag, size = 0x4, scoped, tag = 'scoped memory for tpu_custom_call.1']
    #allocation4 [shape = 's32[1]{0}', space=sflag, size = 0x4, scoped, tag = 'scoped memory for tpu_custom_call.1']
    #allocation5 [shape = 'u8[65536]{0}', space=vmem, size = 0x10000, scoped, tag = 'input window, operand 1, single buffered']
    #allocation6 [shape = 's32[1]{0}', space=sflag, size = 0x4, scoped, tag = 'scoped memory for tpu_custom_call.1']
    #allocation7 [shape = 'u8[131072]{0}', space=vmem, size = 0x20000, scoped, tag = 'input window, operand 2, single buffered']
    #allocation8 [shape = 'u8[196608]{0}', space=vmem, size = 0x30000, scoped, tag = 'input window, operand 5, single buffered']
    #allocation9 [shape = 's32[1]{0}', space=sflag, size = 0x4, scoped, tag = 'scoped memory for tpu_custom_call.1']
    #allocation10 [shape = 'u8[65536]{0}', space=vmem, size = 0x10000, scoped, tag = 'output window, operand 0, single buffered']
    %14 = vsyncpa [#allocation3], 0
    %15 = vsyncpa [#allocation6], 0
    %16 = vsyncpa [#allocation9], 0
    %17 = vsyncpa [#allocation4], 0
    // Predicated region
    $region2: #{tpu_custom_call.1} parent=1 // pred_check
      _
    $region3: #{tpu_custom_call.1} parent=1 // pred_check_branch
      %19 = sbr.rel (0) target = $region5
    $region4: #{tpu_custom_call.1} parent=1 // pred_region
      %s21 = ssub.s32 2048, 2048
      %22 = vsyncadd [#allocation3], %s21
      %s23 = sshll.u32 [#allocation2], 4
      %s24 = int_to_ptr.vmem [resolvable:$true] %s23
      %29 = dma.hbm_to_vmem [thread:$0]  %s0, 2048, %s24, [#allocation3], 128, 128, 8
    $region5: #{tpu_custom_call.1} parent=1 // pred_fallthru
      _
    // Predicated region
    $region6: #{tpu_custom_call.1} parent=1 // pred_check
      _
    $region7: #{tpu_custom_call.1} parent=1 // pred_check_branch
      %31 = sbr.rel (0) target = $region9
    $region8: #{tpu_custom_call.1} parent=1 // pred_region
      %s33 = ssub.s32 2048, 2048
      %34 = vsyncadd [#allocation6], %s33
      %s35 = sshll.u32 [#allocation5], 4
      %s36 = int_to_ptr.vmem [resolvable:$true] %s35
      %41 = dma.hbm_to_vmem [thread:$0]  %s1, 2048, %s36, [#allocation6], 128, 128, 8
    $region9: #{tpu_custom_call.1} parent=1 // pred_fallthru
      _
    // Predicated region
    $region10: #{tpu_custom_call.1} parent=1 // pred_check
      _
    $region11: #{tpu_custom_call.1} parent=1 // pred_check_branch
      %43 = sbr.rel (0) target = $region13
    $region12: #{tpu_custom_call.1} parent=1 // pred_region
      %s45 = ssub.s32 4096, 4096
      %46 = vsyncadd [#allocation6], %s45
      %s47 = sshll.u32 [#allocation7], 4
      %s48 = int_to_ptr.vmem [resolvable:$true] %s47
      %53 = dma.hbm_to_vmem [thread:$0]  %s2, 4096, %s48, [#allocation6], 128, 128, 8
    $region13: #{tpu_custom_call.1} parent=1 // pred_fallthru
      _
    // Predicated region
    $region14: #{tpu_custom_call.1} parent=1 // pred_check
      _
    $region15: #{tpu_custom_call.1} parent=1 // pred_check_branch
      %55 = sbr.rel (0) target = $region17
    $region16: #{tpu_custom_call.1} parent=1 // pred_region
      _
    $region17: #{tpu_custom_call.1} parent=1 // pred_fallthru
      _
    // Predicated region
    $region18: #{tpu_custom_call.1} parent=1 // pred_check
      _
    $region19: #{tpu_custom_call.1} parent=1 // pred_check_branch
      %57 = sbr.rel (0) target = $region21
    $region20: #{tpu_custom_call.1} parent=1 // pred_region
      _
    $region21: #{tpu_custom_call.1} parent=1 // pred_fallthru
      _
    // Predicated region
    $region22: #{tpu_custom_call.1} parent=1 // pred_check
      _
    $region23: #{tpu_custom_call.1} parent=1 // pred_check_branch
      %59 = sbr.rel (0) target = $region25
    $region24: #{tpu_custom_call.1} parent=1 // pred_region
      %s61 = ssub.s32 6144, 6144
      %62 = vsyncadd [#allocation9], %s61
      %s63 = sshll.u32 [#allocation8], 4
      %s64 = int_to_ptr.vmem [resolvable:$true] %s63
      %69 = dma.hbm_to_vmem [thread:$0]  %s5, 6144, %s64, [#allocation9], 128, 128, 8
    $region25: #{tpu_custom_call.1} parent=1 // pred_fallthru
      _
    // Predicated region
    $region26: #{tpu_custom_call.1} parent=1 // pred_check
      _
    $region27: #{tpu_custom_call.1} parent=1 // pred_check_branch
      %71 = sbr.rel (0) target = $region29
    $region28: #{tpu_custom_call.1} parent=1 // pred_region
      _
    $region29: #{tpu_custom_call.1} parent=1 // pred_fallthru
      _
    // Predicated region
    $region30: #{tpu_custom_call.1} parent=1 // pred_check
      _
    $region31: #{tpu_custom_call.1} parent=1 // pred_check_branch
      %73 = sbr.rel (0) target = $region33
    $region32: #{tpu_custom_call.1} parent=1 // pred_region
      _
    $region33: #{tpu_custom_call.1} parent=1 // pred_fallthru
      _
    // Predicated region
    $region34: #{tpu_custom_call.1} parent=1 // pred_check
      _
    $region35: #{tpu_custom_call.1} parent=1 // pred_check_branch
      %75 = sbr.rel (0) target = $region37
    $region36: #{tpu_custom_call.1} parent=1 // pred_region
      _
    $region37: #{tpu_custom_call.1} parent=1 // pred_fallthru
      _
    // Predicated region
    $region38: #{tpu_custom_call.1} parent=1 // pred_check
      _
    $region39: #{tpu_custom_call.1} parent=1 // pred_check_branch
      %77 = sbr.rel (0) target = $region41
    $region40: #{tpu_custom_call.1} parent=1 // pred_region
      %78 = dma.done [#allocation3], 2048
    $region41: #{tpu_custom_call.1} parent=1 // pred_fallthru
      _
    // Predicated region
    $region42: #{tpu_custom_call.1} parent=1 // pred_check
      _
    $region43: #{tpu_custom_call.1} parent=1 // pred_check_branch
      %80 = sbr.rel (0) target = $region45
    $region44: #{tpu_custom_call.1} parent=1 // pred_region
      %81 = dma.done [#allocation6], 2048
    $region45: #{tpu_custom_call.1} parent=1 // pred_fallthru
      _
    // Predicated region
    $region46: #{tpu_custom_call.1} parent=1 // pred_check
      _
    $region47: #{tpu_custom_call.1} parent=1 // pred_check_branch
      %83 = sbr.rel (0) target = $region49
    $region48: #{tpu_custom_call.1} parent=1 // pred_region
      %84 = dma.done [#allocation6], 4096
    $region49: #{tpu_custom_call.1} parent=1 // pred_fallthru
      _
    // Predicated region
    $region50: #{tpu_custom_call.1} parent=1 // pred_check
      _
    $region51: #{tpu_custom_call.1} parent=1 // pred_check_branch
      %86 = sbr.rel (0) target = $region53
    $region52: #{tpu_custom_call.1} parent=1 // pred_region
      %87 = dma.done [#allocation9], 6144
    $region53: #{tpu_custom_call.1} parent=1 // pred_fallthru
      _
    %v88 = vld [vmem:[#allocation2] sm:$0xff]
    %v89 = vld [vmem:[#allocation2 + $0x8] sm:$0xff]
    %v90 = vld [vmem:[#allocation2 + $0x10] sm:$0xff]
    %v91 = vld [vmem:[#allocation2 + $0x18] sm:$0xff]
    %v92 = vld [vmem:[#allocation2 + $0x20] sm:$0xff]
    %v93 = vld [vmem:[#allocation2 + $0x28] sm:$0xff]
    %v94 = vld [vmem:[#allocation2 + $0x30] sm:$0xff]
    %v95 = vld [vmem:[#allocation2 + $0x38] sm:$0xff]
    %v96 = vld [vmem:[#allocation2 + $0x40] sm:$0xff]
    %v97 = vld [vmem:[#allocation2 + $0x48] sm:$0xff]
    %v98 = vld [vmem:[#allocation2 + $0x50] sm:$0xff]
    %v99 = vld [vmem:[#allocation2 + $0x58] sm:$0xff]
    %v100 = vld [vmem:[#allocation2 + $0x60] sm:$0xff]
    %v101 = vld [vmem:[#allocation2 + $0x68] sm:$0xff]
    %v102 = vld [vmem:[#allocation2 + $0x70] sm:$0xff]
    %v103 = vld [vmem:[#allocation2 + $0x78] sm:$0xff]
    %v104 = vld [vmem:[#allocation8] sm:$0xff]
    %v105 = vld [vmem:[#allocation8 + $0x8] sm:$0xff]
    %v106 = vld [vmem:[#allocation8 + $0x10] sm:$0xff]
    %v107 = vld [vmem:[#allocation8 + $0x18] sm:$0xff]
    %v108 = vld [vmem:[#allocation8 + $0x20] sm:$0xff]
    %v109 = vld [vmem:[#allocation8 + $0x28] sm:$0xff]
    %v110 = vld [vmem:[#allocation8 + $0x30] sm:$0xff]
    %v111 = vld [vmem:[#allocation8 + $0x38] sm:$0xff]
    %v112 = vld [vmem:[#allocation8 + $0x40] sm:$0xff]
    %v113 = vld [vmem:[#allocation8 + $0x48] sm:$0xff]
    %v114 = vld [vmem:[#allocation8 + $0x50] sm:$0xff]
    %v115 = vld [vmem:[#allocation8 + $0x58] sm:$0xff]
    %v116 = vld [vmem:[#allocation8 + $0x60] sm:$0xff]
    %v117 = vld [vmem:[#allocation8 + $0x68] sm:$0xff]
    %v118 = vld [vmem:[#allocation8 + $0x70] sm:$0xff]
    %v119 = vld [vmem:[#allocation8 + $0x78] sm:$0xff]
    %v120 = vld [vmem:[%s6] sm:$0x1]
    %v122 = vlaneseq
    %v123 = vshrl.u32 %v122, 7
    %v124 = vsub.s32 0, %v123
    %v125 = vrot.slane %v120, %v124
    %127 = vmatprep.subr.mxu0 0.0
    %128 = vmatpush1.msra.mxu0 %v104
    %129 = vmatprep.subr.mxu0 0.0
    %130 = vmatpush1.msra.mxu0 %v105
    %131 = vmatprep.subr.mxu0 0.0
    %132 = vmatpush1.msra.mxu0 %v106
    %133 = vmatprep.subr.mxu0 0.0
    %134 = vmatpush1.msra.mxu0 %v107
    %135 = vmatprep.subr.mxu0 0.0
    %136 = vmatpush1.msra.mxu0 %v108
    %137 = vmatprep.subr.mxu0 0.0
    %138 = vmatpush1.msra.mxu0 %v109
    %139 = vmatprep.subr.mxu0 0.0
    %140 = vmatpush1.msra.mxu0 %v110
    %141 = vmatprep.subr.mxu0 0.0
    %142 = vmatpush1.msra.mxu0 %v111
    %143 = vmatprep.subr.mxu0 0.0
    %144 = vmatpush1.msra.mxu0 %v112
    %145 = vmatprep.subr.mxu0 0.0
    %146 = vmatpush1.msra.mxu0 %v113
    %147 = vmatprep.subr.mxu0 0.0
    %148 = vmatpush1.msra.mxu0 %v114
    %149 = vmatprep.subr.mxu0 0.0
    %150 = vmatpush1.msra.mxu0 %v115
    %151 = vmatprep.subr.mxu0 0.0
    %152 = vmatpush1.msra.mxu0 %v116
    %153 = vmatprep.subr.mxu0 0.0
    %154 = vmatpush1.msra.mxu0 %v117
    %155 = vmatprep.subr.mxu0 0.0
    %156 = vmatpush1.msra.mxu0 %v118
    %157 = vmatprep.subr.mxu0 0.0
    %158 = vmatpush1.msra.mxu0 %v119
    %159 = vmatprep.subr.mxu0 0.0
    %160 = vmatpush1.msra.mxu0 0.0
    %161 = vmatprep.subr.mxu0 0.0
    %162 = vmatpush1.msra.mxu0 0.0
    %163 = vmatprep.subr.mxu0 0.0
    %164 = vmatpush1.msra.mxu0 0.0
    %165 = vmatprep.subr.mxu0 0.0
    %166 = vmatpush1.msra.mxu0 0.0
    %167 = vmatprep.subr.mxu0 0.0
    %168 = vmatpush1.msra.mxu0 0.0
    %169 = vmatprep.subr.mxu0 0.0
    %170 = vmatpush1.msra.mxu0 0.0
    %171 = vmatprep.subr.mxu0 0.0
    %172 = vmatpush1.msra.mxu0 0.0
    %173 = vmatprep.subr.mxu0 0.0
    %174 = vmatpush1.msra.mxu0 0.0
    %175 = vmatprep.subr.mxu0 0.0
    %176 = vmatpush1.msra.mxu0 0.0
    %177 = vmatprep.subr.mxu0 0.0
    %178 = vmatpush1.msra.mxu0 0.0
    %179 = vmatprep.subr.mxu0 0.0
    %180 = vmatpush1.msra.mxu0 0.0
    %181 = vmatprep.subr.mxu0 0.0
    %182 = vmatpush1.msra.mxu0 0.0
    %183 = vmatprep.subr.mxu0 0.0
    %184 = vmatpush1.msra.mxu0 0.0
    %185 = vmatprep.subr.mxu0 0.0
    %186 = vmatpush1.msra.mxu0 0.0
    %187 = vmatprep.subr.mxu0 0.0
    %188 = vmatpush1.msra.mxu0 0.0
    %189 = vmatprep.subr.mxu0 0.0
    %190 = vmatpush1.msra.mxu0 0.0
    %191 = vmatprep.mubr.f32.mxu0 0.0
    %192 = vmatmul.mubr.f32.gmra.mrb[0].mxu0 %v88
    %v193 = vpop.f32.mrb[0].mxu0
    %v194 = vadd.f32 %v125, %v193
    %v195 = vpop.f32.mrb[0].mxu0
    %196 = vmatprep.mubr.f32.mxu0 0.0
    %197 = vmatmul.mubr.f32.gmra.mrb[0].mxu0 %v89
    %v198 = vpop.f32.mrb[0].mxu0
    %v199 = vadd.f32 %v125, %v198
    %v200 = vpop.f32.mrb[0].mxu0
    %201 = vmatprep.mubr.f32.mxu0 0.0
    %202 = vmatmul.mubr.f32.gmra.mrb[0].mxu0 %v90
    %v203 = vpop.f32.mrb[0].mxu0
    %v204 = vadd.f32 %v125, %v203
    %v205 = vpop.f32.mrb[0].mxu0
    %206 = vmatprep.mubr.f32.mxu0 0.0
    %207 = vmatmul.mubr.f32.gmra.mrb[0].mxu0 %v91
    %v208 = vpop.f32.mrb[0].mxu0
    %v209 = vadd.f32 %v125, %v208
    %v210 = vpop.f32.mrb[0].mxu0
    %211 = vmatprep.mubr.f32.mxu0 0.0
    %212 = vmatmul.mubr.f32.gmra.mrb[0].mxu0 %v92
    %v213 = vpop.f32.mrb[0].mxu0
    %v214 = vadd.f32 %v125, %v213
    %v215 = vpop.f32.mrb[0].mxu0
    %216 = vmatprep.mubr.f32.mxu0 0.0
    %217 = vmatmul.mubr.f32.gmra.mrb[0].mxu0 %v93
    %v218 = vpop.f32.mrb[0].mxu0
    %v219 = vadd.f32 %v125, %v218
    %v220 = vpop.f32.mrb[0].mxu0
    %221 = vmatprep.mubr.f32.mxu0 0.0
    %222 = vmatmul.mubr.f32.gmra.mrb[0].mxu0 %v94
    %v223 = vpop.f32.mrb[0].mxu0
    %v224 = vadd.f32 %v125, %v223
    %v225 = vpop.f32.mrb[0].mxu0
    %226 = vmatprep.mubr.f32.mxu0 0.0
    %227 = vmatmul.mubr.f32.gmra.mrb[0].mxu0 %v95
    %v228 = vpop.f32.mrb[0].mxu0
    %v229 = vadd.f32 %v125, %v228
    %v230 = vpop.f32.mrb[0].mxu0
    %231 = vmatprep.mubr.f32.mxu0 0.0
    %232 = vmatmul.mubr.f32.gmra.mrb[0].mxu0 %v96
    %v233 = vpop.f32.mrb[0].mxu0
    %v234 = vadd.f32 %v125, %v233
    %v235 = vpop.f32.mrb[0].mxu0
    %236 = vmatprep.mubr.f32.mxu0 0.0
    %237 = vmatmul.mubr.f32.gmra.mrb[0].mxu0 %v97
    %v238 = vpop.f32.mrb[0].mxu0
    %v239 = vadd.f32 %v125, %v238
    %v240 = vpop.f32.mrb[0].mxu0
    %241 = vmatprep.mubr.f32.mxu0 0.0
    %242 = vmatmul.mubr.f32.gmra.mrb[0].mxu0 %v98
    %v243 = vpop.f32.mrb[0].mxu0
    %v244 = vadd.f32 %v125, %v243
    %v245 = vpop.f32.mrb[0].mxu0
    %246 = vmatprep.mubr.f32.mxu0 0.0
    %247 = vmatmul.mubr.f32.gmra.mrb[0].mxu0 %v99
    %v248 = vpop.f32.mrb[0].mxu0
    %v249 = vadd.f32 %v125, %v248
    %v250 = vpop.f32.mrb[0].mxu0
    %251 = vmatprep.mubr.f32.mxu0 0.0
    %252 = vmatmul.mubr.f32.gmra.mrb[0].mxu0 %v100
    %v253 = vpop.f32.mrb[0].mxu0
    %v254 = vadd.f32 %v125, %v253
    %v255 = vpop.f32.mrb[0].mxu0
    %256 = vmatprep.mubr.f32.mxu0 0.0
    %257 = vmatmul.mubr.f32.gmra.mrb[0].mxu0 %v101
    %v258 = vpop.f32.mrb[0].mxu0
    %v259 = vadd.f32 %v125, %v258
    %v260 = vpop.f32.mrb[0].mxu0
    %261 = vmatprep.mubr.f32.mxu0 0.0
    %262 = vmatmul.mubr.f32.gmra.mrb[0].mxu0 %v102
    %v263 = vpop.f32.mrb[0].mxu0
    %v264 = vadd.f32 %v125, %v263
    %v265 = vpop.f32.mrb[0].mxu0
    %266 = vmatprep.mubr.f32.mxu0 0.0
    %267 = vmatmul.mubr.f32.gmra.mrb[0].mxu0 %v103
    %v268 = vpop.f32.mrb[0].mxu0
    %v269 = vadd.f32 %v125, %v268
    %v270 = vpop.f32.mrb[0].mxu0
    %271 = vdwg.mxu0
    %v272 = vld [vmem:[%s7] sm:$0x1]
    %v273 = vld [vmem:[%s8] sm:$0x1]
    %274 = vadd.xlane.f32.xlu0 %v194
    %v275 = vpop.xlane.xlu0 %274
    %276 = vadd.xlane.f32.xlu0 %v199
    %v277 = vpop.xlane.xlu0 %276
    %278 = vadd.xlane.f32.xlu0 %v204
    %v279 = vpop.xlane.xlu0 %278
    %280 = vadd.xlane.f32.xlu0 %v209
    %v281 = vpop.xlane.xlu0 %280
    %282 = vadd.xlane.f32.xlu0 %v214
    %v283 = vpop.xlane.xlu0 %282
    %284 = vadd.xlane.f32.xlu0 %v219
    %v285 = vpop.xlane.xlu0 %284
    %286 = vadd.xlane.f32.xlu0 %v224
    %v287 = vpop.xlane.xlu0 %286
    %288 = vadd.xlane.f32.xlu0 %v229
    %v289 = vpop.xlane.xlu0 %288
    %290 = vadd.xlane.f32.xlu0 %v234
    %v291 = vpop.xlane.xlu0 %290
    %292 = vadd.xlane.f32.xlu0 %v239
    %v293 = vpop.xlane.xlu0 %292
    %294 = vadd.xlane.f32.xlu0 %v244
    %v295 = vpop.xlane.xlu0 %294
    %296 = vadd.xlane.f32.xlu0 %v249
    %v297 = vpop.xlane.xlu0 %296
    %298 = vadd.xlane.f32.xlu0 %v254
    %v299 = vpop.xlane.xlu0 %298
    %300 = vadd.xlane.f32.xlu0 %v259
    %v301 = vpop.xlane.xlu0 %300
    %302 = vadd.xlane.f32.xlu0 %v264
    %v303 = vpop.xlane.xlu0 %302
    %304 = vadd.xlane.f32.xlu0 %v269
    %v305 = vpop.xlane.xlu0 %304
    %v306 = vrcp.pop 128.0
    %v307 = vmul.f32 %v275, %v306
    %v308 = vmul.f32 %v277, %v306
    %v309 = vmul.f32 %v279, %v306
    %v310 = vmul.f32 %v281, %v306
    %v311 = vmul.f32 %v283, %v306
    %v312 = vmul.f32 %v285, %v306
    %v313 = vmul.f32 %v287, %v306
    %v314 = vmul.f32 %v289, %v306
    %v315 = vmul.f32 %v291, %v306
    %v316 = vmul.f32 %v293, %v306
    %v317 = vmul.f32 %v295, %v306
    %v318 = vmul.f32 %v297, %v306
    %v319 = vmul.f32 %v299, %v306
    %v320 = vmul.f32 %v301, %v306
    %v321 = vmul.f32 %v303, %v306
    %v322 = vmul.f32 %v305, %v306
    %v323 = vsub.f32 %v194, %v307
    %v324 = vsub.f32 %v199, %v308
    %v325 = vsub.f32 %v204, %v309
    %v326 = vsub.f32 %v209, %v310
    %v327 = vsub.f32 %v214, %v311
    %v328 = vsub.f32 %v219, %v312
    %v329 = vsub.f32 %v224, %v313
    %v330 = vsub.f32 %v229, %v314
    %v331 = vsub.f32 %v234, %v315
    %v332 = vsub.f32 %v239, %v316
    %v333 = vsub.f32 %v244, %v317
    %v334 = vsub.f32 %v249, %v318
    %v335 = vsub.f32 %v254, %v319
    %v336 = vsub.f32 %v259, %v320
    %v337 = vsub.f32 %v264, %v321
    %v338 = vsub.f32 %v269, %v322
    %v339 = vmul.f32 %v323, %v323
    %v340 = vmul.f32 %v324, %v324
    %v341 = vmul.f32 %v325, %v325
    %v342 = vmul.f32 %v326, %v326
    %v343 = vmul.f32 %v327, %v327
    %v344 = vmul.f32 %v328, %v328
    %v345 = vmul.f32 %v329, %v329
    %v346 = vmul.f32 %v330, %v330
    %v347 = vmul.f32 %v331, %v331
    %v348 = vmul.f32 %v332, %v332
    %v349 = vmul.f32 %v333, %v333
    %v350 = vmul.f32 %v334, %v334
    %v351 = vmul.f32 %v335, %v335
    %v352 = vmul.f32 %v336, %v336
    %v353 = vmul.f32 %v337, %v337
    %v354 = vmul.f32 %v338, %v338
    %355 = vadd.xlane.f32.xlu0 %v339
    %v356 = vpop.xlane.xlu0 %355
    %357 = vadd.xlane.f32.xlu0 %v340
    %v358 = vpop.xlane.xlu0 %357
    %359 = vadd.xlane.f32.xlu0 %v341
    %v360 = vpop.xlane.xlu0 %359
    %361 = vadd.xlane.f32.xlu0 %v342
    %v362 = vpop.xlane.xlu0 %361
    %363 = vadd.xlane.f32.xlu0 %v343
    %v364 = vpop.xlane.xlu0 %363
    %365 = vadd.xlane.f32.xlu0 %v344
    %v366 = vpop.xlane.xlu0 %365
    %367 = vadd.xlane.f32.xlu0 %v345
    %v368 = vpop.xlane.xlu0 %367
    %369 = vadd.xlane.f32.xlu0 %v346
    %v370 = vpop.xlane.xlu0 %369
    %371 = vadd.xlane.f32.xlu0 %v347
    %v372 = vpop.xlane.xlu0 %371
    %373 = vadd.xlane.f32.xlu0 %v348
    %v374 = vpop.xlane.xlu0 %373
    %375 = vadd.xlane.f32.xlu0 %v349
    %v376 = vpop.xlane.xlu0 %375
    %377 = vadd.xlane.f32.xlu0 %v350
    %v378 = vpop.xlane.xlu0 %377
    %379 = vadd.xlane.f32.xlu0 %v351
    %v380 = vpop.xlane.xlu0 %379
    %381 = vadd.xlane.f32.xlu0 %v352
    %v382 = vpop.xlane.xlu0 %381
    %383 = vadd.xlane.f32.xlu0 %v353
    %v384 = vpop.xlane.xlu0 %383
    %385 = vadd.xlane.f32.xlu0 %v354
    %v386 = vpop.xlane.xlu0 %385
    %v387 = vmul.f32 %v356, %v306
    %v388 = vmul.f32 %v358, %v306
    %v389 = vmul.f32 %v360, %v306
    %v390 = vmul.f32 %v362, %v306
    %v391 = vmul.f32 %v364, %v306
    %v392 = vmul.f32 %v366, %v306
    %v393 = vmul.f32 %v368, %v306
    %v394 = vmul.f32 %v370, %v306
    %v395 = vmul.f32 %v372, %v306
    %v396 = vmul.f32 %v374, %v306
    %v397 = vmul.f32 %v376, %v306
    %v398 = vmul.f32 %v378, %v306
    %v399 = vmul.f32 %v380, %v306
    %v400 = vmul.f32 %v382, %v306
    %v401 = vmul.f32 %v384, %v306
    %v402 = vmul.f32 %v386, %v306
    %v403 = vadd.f32 %v387, 1e-05
    %v404 = vadd.f32 %v388, 1e-05
    %v405 = vadd.f32 %v389, 1e-05
    %v406 = vadd.f32 %v390, 1e-05
    %v407 = vadd.f32 %v391, 1e-05
    %v408 = vadd.f32 %v392, 1e-05
    %v409 = vadd.f32 %v393, 1e-05
    %v410 = vadd.f32 %v394, 1e-05
    %v411 = vadd.f32 %v395, 1e-05
    %v412 = vadd.f32 %v396, 1e-05
    %v413 = vadd.f32 %v397, 1e-05
    %v414 = vadd.f32 %v398, 1e-05
    %v415 = vadd.f32 %v399, 1e-05
    %v416 = vadd.f32 %v400, 1e-05
    %v417 = vadd.f32 %v401, 1e-05
    %v418 = vadd.f32 %v402, 1e-05
    %v419 = vrsqrt.pop %v403
    %v420 = vrsqrt.pop %v404
    %v421 = vrsqrt.pop %v405
    %v422 = vrsqrt.pop %v406
    %v423 = vrsqrt.pop %v407
    %v424 = vrsqrt.pop %v408
    %v425 = vrsqrt.pop %v409
    %v426 = vrsqrt.pop %v410
    %v427 = vrsqrt.pop %v411
    %v428 = vrsqrt.pop %v412
    %v429 = vrsqrt.pop %v413
    %v430 = vrsqrt.pop %v414
    %v431 = vrsqrt.pop %v415
    %v432 = vrsqrt.pop %v416
    %v433 = vrsqrt.pop %v417
    %v434 = vrsqrt.pop %v418
    %v435 = vmul.f32 %v323, %v419
    %v436 = vmul.f32 %v324, %v420
    %v437 = vmul.f32 %v325, %v421
    %v438 = vmul.f32 %v326, %v422
    %v439 = vmul.f32 %v327, %v423
    %v440 = vmul.f32 %v328, %v424
    %v441 = vmul.f32 %v329, %v425
    %v442 = vmul.f32 %v330, %v426
    %v443 = vmul.f32 %v331, %v427
    %v444 = vmul.f32 %v332, %v428
    %v445 = vmul.f32 %v333, %v429
    %v446 = vmul.f32 %v334, %v430
    %v447 = vmul.f32 %v335, %v431
    %v448 = vmul.f32 %v336, %v432
    %v449 = vmul.f32 %v337, %v433
    %v450 = vmul.f32 %v338, %v434
    %v452 = vlaneseq
    %v453 = vshrl.u32 %v452, 7
    %v454 = vsub.s32 0, %v453
    %v455 = vrot.slane %v272, %v454
    %v457 = vmul.f32 %v435, %v455
    %v458 = vmul.f32 %v436, %v455
    %v459 = vmul.f32 %v437, %v455
    %v460 = vmul.f32 %v438, %v455
    %v461 = vmul.f32 %v439, %v455
    %v462 = vmul.f32 %v440, %v455
    %v463 = vmul.f32 %v441, %v455
    %v464 = vmul.f32 %v442, %v455
    %v465 = vmul.f32 %v443, %v455
    %v466 = vmul.f32 %v444, %v455
    %v467 = vmul.f32 %v445, %v455
    %v468 = vmul.f32 %v446, %v455
    %v469 = vmul.f32 %v447, %v455
    %v470 = vmul.f32 %v448, %v455
    %v471 = vmul.f32 %v449, %v455
    %v472 = vmul.f32 %v450, %v455
    %v474 = vlaneseq
    %v475 = vshrl.u32 %v474, 7
    %v476 = vsub.s32 0, %v475
    %v477 = vrot.slane %v273, %v476
    %v479 = vadd.f32 %v457, %v477
    %v480 = vadd.f32 %v458, %v477
    %v481 = vadd.f32 %v459, %v477
    %v482 = vadd.f32 %v460, %v477
    %v483 = vadd.f32 %v461, %v477
    %v484 = vadd.f32 %v462, %v477
    %v485 = vadd.f32 %v463, %v477
    %v486 = vadd.f32 %v464, %v477
    %v487 = vadd.f32 %v465, %v477
    %v488 = vadd.f32 %v466, %v477
    %v489 = vadd.f32 %v467, %v477
    %v490 = vadd.f32 %v468, %v477
    %v491 = vadd.f32 %v469, %v477
    %v492 = vadd.f32 %v470, %v477
    %v493 = vadd.f32 %v471, %v477
    %v494 = vadd.f32 %v472, %v477
    %v495 = vmax.f32 %v479, 0.0
    %v496 = vmax.f32 %v480, 0.0
    %v497 = vmax.f32 %v481, 0.0
    %v498 = vmax.f32 %v482, 0.0
    %v499 = vmax.f32 %v483, 0.0
    %v500 = vmax.f32 %v484, 0.0
    %v501 = vmax.f32 %v485, 0.0
    %v502 = vmax.f32 %v486, 0.0
    %v503 = vmax.f32 %v487, 0.0
    %v504 = vmax.f32 %v488, 0.0
    %v505 = vmax.f32 %v489, 0.0
    %v506 = vmax.f32 %v490, 0.0
    %v507 = vmax.f32 %v491, 0.0
    %v508 = vmax.f32 %v492, 0.0
    %v509 = vmax.f32 %v493, 0.0
    %v510 = vmax.f32 %v494, 0.0
    %v511 = vld [vmem:[#allocation7] sm:$0xff]
    %v512 = vld [vmem:[#allocation7 + $0x8] sm:$0xff]
    %v513 = vld [vmem:[#allocation7 + $0x10] sm:$0xff]
    %v514 = vld [vmem:[#allocation7 + $0x18] sm:$0xff]
    %v515 = vld [vmem:[#allocation7 + $0x20] sm:$0xff]
    %v516 = vld [vmem:[#allocation7 + $0x28] sm:$0xff]
    %v517 = vld [vmem:[#allocation7 + $0x30] sm:$0xff]
    %v518 = vld [vmem:[#allocation7 + $0x38] sm:$0xff]
    %v519 = vld [vmem:[#allocation7 + $0x40] sm:$0xff]
    %v520 = vld [vmem:[#allocation7 + $0x48] sm:$0xff]
    %v521 = vld [vmem:[#allocation7 + $0x50] sm:$0xff]
    %v522 = vld [vmem:[#allocation7 + $0x58] sm:$0xff]
    %v523 = vld [vmem:[#allocation7 + $0x60] sm:$0xff]
    %v524 = vld [vmem:[#allocation7 + $0x68] sm:$0xff]
    %v525 = vld [vmem:[#allocation7 + $0x70] sm:$0xff]
    %v526 = vld [vmem:[#allocation7 + $0x78] sm:$0xff]
    %527 = vmatprep.subr.mxu0 0.0
    %528 = vmatpush1.msra.mxu0 %v511
    %529 = vmatprep.subr.mxu0 0.0
    %530 = vmatpush1.msra.mxu0 %v512
    %531 = vmatprep.subr.mxu0 0.0
    %532 = vmatpush1.msra.mxu0 %v513
    %533 = vmatprep.subr.mxu0 0.0
    %534 = vmatpush1.msra.mxu0 %v514
    %535 = vmatprep.subr.mxu0 0.0
    %536 = vmatpush1.msra.mxu0 %v515
    %537 = vmatprep.subr.mxu0 0.0
    %538 = vmatpush1.msra.mxu0 %v516
    %539 = vmatprep.subr.mxu0 0.0
    %540 = vmatpush1.msra.mxu0 %v517
    %541 = vmatprep.subr.mxu0 0.0
    %542 = vmatpush1.msra.mxu0 %v518
    %543 = vmatprep.subr.mxu0 0.0
    %544 = vmatpush1.msra.mxu0 %v519
    %545 = vmatprep.subr.mxu0 0.0
    %546 = vmatpush1.msra.mxu0 %v520
    %547 = vmatprep.subr.mxu0 0.0
    %548 = vmatpush1.msra.mxu0 %v521
    %549 = vmatprep.subr.mxu0 0.0
    %550 = vmatpush1.msra.mxu0 %v522
    %551 = vmatprep.subr.mxu0 0.0
    %552 = vmatpush1.msra.mxu0 %v523
    %553 = vmatprep.subr.mxu0 0.0
    %554 = vmatpush1.msra.mxu0 %v524
    %555 = vmatprep.subr.mxu0 0.0
    %556 = vmatpush1.msra.mxu0 %v525
    %557 = vmatprep.subr.mxu0 0.0
    %558 = vmatpush1.msra.mxu0 %v526
    %559 = vmatprep.subr.mxu0 0.0
    %560 = vmatpush1.msra.mxu0 0.0
    %561 = vmatprep.subr.mxu0 0.0
    %562 = vmatpush1.msra.mxu0 0.0
    %563 = vmatprep.subr.mxu0 0.0
    %564 = vmatpush1.msra.mxu0 0.0
    %565 = vmatprep.subr.mxu0 0.0
    %566 = vmatpush1.msra.mxu0 0.0
    %567 = vmatprep.subr.mxu0 0.0
    %568 = vmatpush1.msra.mxu0 0.0
    %569 = vmatprep.subr.mxu0 0.0
    %570 = vmatpush1.msra.mxu0 0.0
    %571 = vmatprep.subr.mxu0 0.0
    %572 = vmatpush1.msra.mxu0 0.0
    %573 = vmatprep.subr.mxu0 0.0
    %574 = vmatpush1.msra.mxu0 0.0
    %575 = vmatprep.subr.mxu0 0.0
    %576 = vmatpush1.msra.mxu0 0.0
    %577 = vmatprep.subr.mxu0 0.0
    %578 = vmatpush1.msra.mxu0 0.0
    %579 = vmatprep.subr.mxu0 0.0
    %580 = vmatpush1.msra.mxu0 0.0
    %581 = vmatprep.subr.mxu0 0.0
    %582 = vmatpush1.msra.mxu0 0.0
    %583 = vmatprep.subr.mxu0 0.0
    %584 = vmatpush1.msra.mxu0 0.0
    %585 = vmatprep.subr.mxu0 0.0
    %586 = vmatpush1.msra.mxu0 0.0
    %587 = vmatprep.subr.mxu0 0.0
    %588 = vmatpush1.msra.mxu0 0.0
    %589 = vmatprep.subr.mxu0 0.0
    %590 = vmatpush1.msra.mxu0 0.0
    %591 = vmatprep.mubr.f32.mxu0 0.0
    %592 = vmatmul.mubr.f32.gmra.mrb[0].mxu0 %v88
    %v593 = vpop.f32.mrb[0].mxu0
    %v594 = vadd.f32 0.0, %v593
    %v595 = vpop.f32.mrb[0].mxu0
    %596 = vmatprep.mubr.f32.mxu0 0.0
    %597 = vmatmul.mubr.f32.gmra.mrb[0].mxu0 %v89
    %v598 = vpop.f32.mrb[0].mxu0
    %v599 = vadd.f32 0.0, %v598
    %v600 = vpop.f32.mrb[0].mxu0
    %601 = vmatprep.mubr.f32.mxu0 0.0
    %602 = vmatmul.mubr.f32.gmra.mrb[0].mxu0 %v90
    %v603 = vpop.f32.mrb[0].mxu0
    %v604 = vadd.f32 0.0, %v603
    %v605 = vpop.f32.mrb[0].mxu0
    %606 = vmatprep.mubr.f32.mxu0 0.0
    %607 = vmatmul.mubr.f32.gmra.mrb[0].mxu0 %v91
    %v608 = vpop.f32.mrb[0].mxu0
    %v609 = vadd.f32 0.0, %v608
    %v610 = vpop.f32.mrb[0].mxu0
    %611 = vmatprep.mubr.f32.mxu0 0.0
    %612 = vmatmul.mubr.f32.gmra.mrb[0].mxu0 %v92
    %v613 = vpop.f32.mrb[0].mxu0
    %v614 = vadd.f32 0.0, %v613
    %v615 = vpop.f32.mrb[0].mxu0
    %616 = vmatprep.mubr.f32.mxu0 0.0
    %617 = vmatmul.mubr.f32.gmra.mrb[0].mxu0 %v93
    %v618 = vpop.f32.mrb[0].mxu0
    %v619 = vadd.f32 0.0, %v618
    %v620 = vpop.f32.mrb[0].mxu0
    %621 = vmatprep.mubr.f32.mxu0 0.0
    %622 = vmatmul.mubr.f32.gmra.mrb[0].mxu0 %v94
    %v623 = vpop.f32.mrb[0].mxu0
    %v624 = vadd.f32 0.0, %v623
    %v625 = vpop.f32.mrb[0].mxu0
    %626 = vmatprep.mubr.f32.mxu0 0.0
    %627 = vmatmul.mubr.f32.gmra.mrb[0].mxu0 %v95
    %v628 = vpop.f32.mrb[0].mxu0
    %v629 = vadd.f32 0.0, %v628
    %v630 = vpop.f32.mrb[0].mxu0
    %631 = vmatprep.mubr.f32.mxu0 0.0
    %632 = vmatmul.mubr.f32.gmra.mrb[0].mxu0 %v96
    %v633 = vpop.f32.mrb[0].mxu0
    %v634 = vadd.f32 0.0, %v633
    %v635 = vpop.f32.mrb[0].mxu0
    %636 = vmatprep.mubr.f32.mxu0 0.0
    %637 = vmatmul.mubr.f32.gmra.mrb[0].mxu0 %v97
    %v638 = vpop.f32.mrb[0].mxu0
    %v639 = vadd.f32 0.0, %v638
    %v640 = vpop.f32.mrb[0].mxu0
    %641 = vmatprep.mubr.f32.mxu0 0.0
    %642 = vmatmul.mubr.f32.gmra.mrb[0].mxu0 %v98
    %v643 = vpop.f32.mrb[0].mxu0
    %v644 = vadd.f32 0.0, %v643
    %v645 = vpop.f32.mrb[0].mxu0
    %646 = vmatprep.mubr.f32.mxu0 0.0
    %647 = vmatmul.mubr.f32.gmra.mrb[0].mxu0 %v99
    %v648 = vpop.f32.mrb[0].mxu0
    %v649 = vadd.f32 0.0, %v648
    %v650 = vpop.f32.mrb[0].mxu0
    %651 = vmatprep.mubr.f32.mxu0 0.0
    %652 = vmatmul.mubr.f32.gmra.mrb[0].mxu0 %v100
    %v653 = vpop.f32.mrb[0].mxu0
    %v654 = vadd.f32 0.0, %v653
    %v655 = vpop.f32.mrb[0].mxu0
    %656 = vmatprep.mubr.f32.mxu0 0.0
    %657 = vmatmul.mubr.f32.gmra.mrb[0].mxu0 %v101
    %v658 = vpop.f32.mrb[0].mxu0
    %v659 = vadd.f32 0.0, %v658
    %v660 = vpop.f32.mrb[0].mxu0
    %661 = vmatprep.mubr.f32.mxu0 0.0
    %662 = vmatmul.mubr.f32.gmra.mrb[0].mxu0 %v102
    %v663 = vpop.f32.mrb[0].mxu0
    %v664 = vadd.f32 0.0, %v663
    %v665 = vpop.f32.mrb[0].mxu0
    %666 = vmatprep.mubr.f32.mxu0 0.0
    %667 = vmatmul.mubr.f32.gmra.mrb[0].mxu0 %v103
    %v668 = vpop.f32.mrb[0].mxu0
    %v669 = vadd.f32 0.0, %v668
    %v670 = vpop.f32.mrb[0].mxu0
    %671 = vdwg.mxu0
    %v672 = vld [vmem:[#allocation5] sm:$0xff]
    %v673 = vld [vmem:[#allocation5 + $0x8] sm:$0xff]
    %v674 = vld [vmem:[#allocation5 + $0x10] sm:$0xff]
    %v675 = vld [vmem:[#allocation5 + $0x18] sm:$0xff]
    %v676 = vld [vmem:[#allocation5 + $0x20] sm:$0xff]
    %v677 = vld [vmem:[#allocation5 + $0x28] sm:$0xff]
    %v678 = vld [vmem:[#allocation5 + $0x30] sm:$0xff]
    %v679 = vld [vmem:[#allocation5 + $0x38] sm:$0xff]
    %v680 = vld [vmem:[#allocation5 + $0x40] sm:$0xff]
    %v681 = vld [vmem:[#allocation5 + $0x48] sm:$0xff]
    %v682 = vld [vmem:[#allocation5 + $0x50] sm:$0xff]
    %v683 = vld [vmem:[#allocation5 + $0x58] sm:$0xff]
    %v684 = vld [vmem:[#allocation5 + $0x60] sm:$0xff]
    %v685 = vld [vmem:[#allocation5 + $0x68] sm:$0xff]
    %v686 = vld [vmem:[#allocation5 + $0x70] sm:$0xff]
    %v687 = vld [vmem:[#allocation5 + $0x78] sm:$0xff]
    %688 = vmatprep.subr.mxu0 0.0
    %689 = vmatpush1.msra.mxu0 %v594
    %690 = vmatprep.subr.mxu0 0.0
    %691 = vmatpush1.msra.mxu0 %v599
    %692 = vmatprep.subr.mxu0 0.0
    %693 = vmatpush1.msra.mxu0 %v604
    %694 = vmatprep.subr.mxu0 0.0
    %695 = vmatpush1.msra.mxu0 %v609
    %696 = vmatprep.subr.mxu0 0.0
    %697 = vmatpush1.msra.mxu0 %v614
    %698 = vmatprep.subr.mxu0 0.0
    %699 = vmatpush1.msra.mxu0 %v619
    %700 = vmatprep.subr.mxu0 0.0
    %701 = vmatpush1.msra.mxu0 %v624
    %702 = vmatprep.subr.mxu0 0.0
    %703 = vmatpush1.msra.mxu0 %v629
    %704 = vmatprep.subr.mxu0 0.0
    %705 = vmatpush1.msra.mxu0 %v634
    %706 = vmatprep.subr.mxu0 0.0
    %707 = vmatpush1.msra.mxu0 %v639
    %708 = vmatprep.subr.mxu0 0.0
    %709 = vmatpush1.msra.mxu0 %v644
    %710 = vmatprep.subr.mxu0 0.0
    %711 = vmatpush1.msra.mxu0 %v649
    %712 = vmatprep.subr.mxu0 0.0
    %713 = vmatpush1.msra.mxu0 %v654
    %714 = vmatprep.subr.mxu0 0.0
    %715 = vmatpush1.msra.mxu0 %v659
    %716 = vmatprep.subr.mxu0 0.0
    %717 = vmatpush1.msra.mxu0 %v664
    %718 = vmatprep.subr.mxu0 0.0
    %719 = vmatpush1.msra.mxu0 %v669
    %720 = vmatprep.subr.mxu0 0.0
    %721 = vmatpush1.msra.mxu0 0.0
    %722 = vmatprep.subr.mxu0 0.0
    %723 = vmatpush1.msra.mxu0 0.0
    %724 = vmatprep.subr.mxu0 0.0
    %725 = vmatpush1.msra.mxu0 0.0
    %726 = vmatprep.subr.mxu0 0.0
    %727 = vmatpush1.msra.mxu0 0.0
    %728 = vmatprep.subr.mxu0 0.0
    %729 = vmatpush1.msra.mxu0 0.0
    %730 = vmatprep.subr.mxu0 0.0
    %731 = vmatpush1.msra.mxu0 0.0
    %732 = vmatprep.subr.mxu0 0.0
    %733 = vmatpush1.msra.mxu0 0.0
    %734 = vmatprep.subr.mxu0 0.0
    %735 = vmatpush1.msra.mxu0 0.0
    %736 = vmatprep.subr.mxu0 0.0
    %737 = vmatpush1.msra.mxu0 0.0
    %738 = vmatprep.subr.mxu0 0.0
    %739 = vmatpush1.msra.mxu0 0.0
    %740 = vmatprep.subr.mxu0 0.0
    %741 = vmatpush1.msra.mxu0 0.0
    %742 = vmatprep.subr.mxu0 0.0
    %743 = vmatpush1.msra.mxu0 0.0
    %744 = vmatprep.subr.mxu0 0.0
    %745 = vmatpush1.msra.mxu0 0.0
    %746 = vmatprep.subr.mxu0 0.0
    %747 = vmatpush1.msra.mxu0 0.0
    %748 = vmatprep.subr.mxu0 0.0
    %749 = vmatpush1.msra.mxu0 0.0
    %750 = vmatprep.subr.mxu0 0.0
    %751 = vmatpush1.msra.mxu0 0.0
    %752 = vmatprep.mubr.f32.mxu0 0.0
    %753 = vmatmul.mubr.f32.gmra.mrb[0].mxu0 %v672
    %v754 = vpop.f32.mrb[0].mxu0
    %v755 = vadd.f32 0.0, %v754
    %v756 = vpop.f32.mrb[0].mxu0
    %757 = vmatprep.mubr.f32.mxu0 0.0
    %758 = vmatmul.mubr.f32.gmra.mrb[0].mxu0 %v673
    %v759 = vpop.f32.mrb[0].mxu0
    %v760 = vadd.f32 0.0, %v759
    %v761 = vpop.f32.mrb[0].mxu0
    %762 = vmatprep.mubr.f32.mxu0 0.0
    %763 = vmatmul.mubr.f32.gmra.mrb[0].mxu0 %v674
    %v764 = vpop.f32.mrb[0].mxu0
    %v765 = vadd.f32 0.0, %v764
    %v766 = vpop.f32.mrb[0].mxu0
    %767 = vmatprep.mubr.f32.mxu0 0.0
    %768 = vmatmul.mubr.f32.gmra.mrb[0].mxu0 %v675
    %v769 = vpop.f32.mrb[0].mxu0
    %v770 = vadd.f32 0.0, %v769
    %v771 = vpop.f32.mrb[0].mxu0
    %772 = vmatprep.mubr.f32.mxu0 0.0
    %773 = vmatmul.mubr.f32.gmra.mrb[0].mxu0 %v676
    %v774 = vpop.f32.mrb[0].mxu0
    %v775 = vadd.f32 0.0, %v774
    %v776 = vpop.f32.mrb[0].mxu0
    %777 = vmatprep.mubr.f32.mxu0 0.0
    %778 = vmatmul.mubr.f32.gmra.mrb[0].mxu0 %v677
    %v779 = vpop.f32.mrb[0].mxu0
    %v780 = vadd.f32 0.0, %v779
    %v781 = vpop.f32.mrb[0].mxu0
    %782 = vmatprep.mubr.f32.mxu0 0.0
    %783 = vmatmul.mubr.f32.gmra.mrb[0].mxu0 %v678
    %v784 = vpop.f32.mrb[0].mxu0
    %v785 = vadd.f32 0.0, %v784
    %v786 = vpop.f32.mrb[0].mxu0
    %787 = vmatprep.mubr.f32.mxu0 0.0
    %788 = vmatmul.mubr.f32.gmra.mrb[0].mxu0 %v679
    %v789 = vpop.f32.mrb[0].mxu0
    %v790 = vadd.f32 0.0, %v789
    %v791 = vpop.f32.mrb[0].mxu0
    %792 = vmatprep.mubr.f32.mxu0 0.0
    %793 = vmatmul.mubr.f32.gmra.mrb[0].mxu0 %v680
    %v794 = vpop.f32.mrb[0].mxu0
    %v795 = vadd.f32 0.0, %v794
    %v796 = vpop.f32.mrb[0].mxu0
    %797 = vmatprep.mubr.f32.mxu0 0.0
    %798 = vmatmul.mubr.f32.gmra.mrb[0].mxu0 %v681
    %v799 = vpop.f32.mrb[0].mxu0
    %v800 = vadd.f32 0.0, %v799
    %v801 = vpop.f32.mrb[0].mxu0
    %802 = vmatprep.mubr.f32.mxu0 0.0
    %803 = vmatmul.mubr.f32.gmra.mrb[0].mxu0 %v682
    %v804 = vpop.f32.mrb[0].mxu0
    %v805 = vadd.f32 0.0, %v804
    %v806 = vpop.f32.mrb[0].mxu0
    %807 = vmatprep.mubr.f32.mxu0 0.0
    %808 = vmatmul.mubr.f32.gmra.mrb[0].mxu0 %v683
    %v809 = vpop.f32.mrb[0].mxu0
    %v810 = vadd.f32 0.0, %v809
    %v811 = vpop.f32.mrb[0].mxu0
    %812 = vmatprep.mubr.f32.mxu0 0.0
    %813 = vmatmul.mubr.f32.gmra.mrb[0].mxu0 %v684
    %v814 = vpop.f32.mrb[0].mxu0
    %v815 = vadd.f32 0.0, %v814
    %v816 = vpop.f32.mrb[0].mxu0
    %817 = vmatprep.mubr.f32.mxu0 0.0
    %818 = vmatmul.mubr.f32.gmra.mrb[0].mxu0 %v685
    %v819 = vpop.f32.mrb[0].mxu0
    %v820 = vadd.f32 0.0, %v819
    %v821 = vpop.f32.mrb[0].mxu0
    %822 = vmatprep.mubr.f32.mxu0 0.0
    %823 = vmatmul.mubr.f32.gmra.mrb[0].mxu0 %v686
    %v824 = vpop.f32.mrb[0].mxu0
    %v825 = vadd.f32 0.0, %v824
    %v826 = vpop.f32.mrb[0].mxu0
    %827 = vmatprep.mubr.f32.mxu0 0.0
    %828 = vmatmul.mubr.f32.gmra.mrb[0].mxu0 %v687
    %v829 = vpop.f32.mrb[0].mxu0
    %v830 = vadd.f32 0.0, %v829
    %v831 = vpop.f32.mrb[0].mxu0
    %832 = vdwg.mxu0
    %v833 = vadd.f32 %v88, %v755
    %v834 = vadd.f32 %v89, %v760
    %v835 = vadd.f32 %v90, %v765
    %v836 = vadd.f32 %v91, %v770
    %v837 = vadd.f32 %v92, %v775
    %v838 = vadd.f32 %v93, %v780
    %v839 = vadd.f32 %v94, %v785
    %v840 = vadd.f32 %v95, %v790
    %v841 = vadd.f32 %v96, %v795
    %v842 = vadd.f32 %v97, %v800
    %v843 = vadd.f32 %v98, %v805
    %v844 = vadd.f32 %v99, %v810
    %v845 = vadd.f32 %v100, %v815
    %v846 = vadd.f32 %v101, %v820
    %v847 = vadd.f32 %v102, %v825
    %v848 = vadd.f32 %v103, %v830
    %v849 = vld [vmem:[%s3] sm:$0x1]
    %v850 = vld [vmem:[%s4] sm:$0x1]
    %851 = vadd.xlane.f32.xlu0 %v833
    %v852 = vpop.xlane.xlu0 %851
    %853 = vadd.xlane.f32.xlu0 %v834
    %v854 = vpop.xlane.xlu0 %853
    %855 = vadd.xlane.f32.xlu0 %v835
    %v856 = vpop.xlane.xlu0 %855
    %857 = vadd.xlane.f32.xlu0 %v836
    %v858 = vpop.xlane.xlu0 %857
    %859 = vadd.xlane.f32.xlu0 %v837
    %v860 = vpop.xlane.xlu0 %859
    %861 = vadd.xlane.f32.xlu0 %v838
    %v862 = vpop.xlane.xlu0 %861
    %863 = vadd.xlane.f32.xlu0 %v839
    %v864 = vpop.xlane.xlu0 %863
    %865 = vadd.xlane.f32.xlu0 %v840
    %v866 = vpop.xlane.xlu0 %865
    %867 = vadd.xlane.f32.xlu0 %v841
    %v868 = vpop.xlane.xlu0 %867
    %869 = vadd.xlane.f32.xlu0 %v842
    %v870 = vpop.xlane.xlu0 %869
    %871 = vadd.xlane.f32.xlu0 %v843
    %v872 = vpop.xlane.xlu0 %871
    %873 = vadd.xlane.f32.xlu0 %v844
    %v874 = vpop.xlane.xlu0 %873
    %875 = vadd.xlane.f32.xlu0 %v845
    %v876 = vpop.xlane.xlu0 %875
    %877 = vadd.xlane.f32.xlu0 %v846
    %v878 = vpop.xlane.xlu0 %877
    %879 = vadd.xlane.f32.xlu0 %v847
    %v880 = vpop.xlane.xlu0 %879
    %881 = vadd.xlane.f32.xlu0 %v848
    %v882 = vpop.xlane.xlu0 %881
    %v883 = vmul.f32 %v852, %v306
    %v884 = vmul.f32 %v854, %v306
    %v885 = vmul.f32 %v856, %v306
    %v886 = vmul.f32 %v858, %v306
    %v887 = vmul.f32 %v860, %v306
    %v888 = vmul.f32 %v862, %v306
    %v889 = vmul.f32 %v864, %v306
    %v890 = vmul.f32 %v866, %v306
    %v891 = vmul.f32 %v868, %v306
    %v892 = vmul.f32 %v870, %v306
    %v893 = vmul.f32 %v872, %v306
    %v894 = vmul.f32 %v874, %v306
    %v895 = vmul.f32 %v876, %v306
    %v896 = vmul.f32 %v878, %v306
    %v897 = vmul.f32 %v880, %v306
    %v898 = vmul.f32 %v882, %v306
    %v899 = vsub.f32 %v833, %v883
    %v900 = vsub.f32 %v834, %v884
    %v901 = vsub.f32 %v835, %v885
    %v902 = vsub.f32 %v836, %v886
    %v903 = vsub.f32 %v837, %v887
    %v904 = vsub.f32 %v838, %v888
    %v905 = vsub.f32 %v839, %v889
    %v906 = vsub.f32 %v840, %v890
    %v907 = vsub.f32 %v841, %v891
    %v908 = vsub.f32 %v842, %v892
    %v909 = vsub.f32 %v843, %v893
    %v910 = vsub.f32 %v844, %v894
    %v911 = vsub.f32 %v845, %v895
    %v912 = vsub.f32 %v846, %v896
    %v913 = vsub.f32 %v847, %v897
    %v914 = vsub.f32 %v848, %v898
    %v915 = vmul.f32 %v899, %v899
    %v916 = vmul.f32 %v900, %v900
    %v917 = vmul.f32 %v901, %v901
    %v918 = vmul.f32 %v902, %v902
    %v919 = vmul.f32 %v903, %v903
    %v920 = vmul.f32 %v904, %v904
    %v921 = vmul.f32 %v905, %v905
    %v922 = vmul.f32 %v906, %v906
    %v923 = vmul.f32 %v907, %v907
    %v924 = vmul.f32 %v908, %v908
    %v925 = vmul.f32 %v909, %v909
    %v926 = vmul.f32 %v910, %v910
    %v927 = vmul.f32 %v911, %v911
    %v928 = vmul.f32 %v912, %v912
    %v929 = vmul.f32 %v913, %v913
    %v930 = vmul.f32 %v914, %v914
    %931 = vadd.xlane.f32.xlu0 %v915
    %v932 = vpop.xlane.xlu0 %931
    %933 = vadd.xlane.f32.xlu0 %v916
    %v934 = vpop.xlane.xlu0 %933
    %935 = vadd.xlane.f32.xlu0 %v917
    %v936 = vpop.xlane.xlu0 %935
    %937 = vadd.xlane.f32.xlu0 %v918
    %v938 = vpop.xlane.xlu0 %937
    %939 = vadd.xlane.f32.xlu0 %v919
    %v940 = vpop.xlane.xlu0 %939
    %941 = vadd.xlane.f32.xlu0 %v920
    %v942 = vpop.xlane.xlu0 %941
    %943 = vadd.xlane.f32.xlu0 %v921
    %v944 = vpop.xlane.xlu0 %943
    %945 = vadd.xlane.f32.xlu0 %v922
    %v946 = vpop.xlane.xlu0 %945
    %947 = vadd.xlane.f32.xlu0 %v923
    %v948 = vpop.xlane.xlu0 %947
    %949 = vadd.xlane.f32.xlu0 %v924
    %v950 = vpop.xlane.xlu0 %949
    %951 = vadd.xlane.f32.xlu0 %v925
    %v952 = vpop.xlane.xlu0 %951
    %953 = vadd.xlane.f32.xlu0 %v926
    %v954 = vpop.xlane.xlu0 %953
    %955 = vadd.xlane.f32.xlu0 %v927
    %v956 = vpop.xlane.xlu0 %955
    %957 = vadd.xlane.f32.xlu0 %v928
    %v958 = vpop.xlane.xlu0 %957
    %959 = vadd.xlane.f32.xlu0 %v929
    %v960 = vpop.xlane.xlu0 %959
    %961 = vadd.xlane.f32.xlu0 %v930
    %v962 = vpop.xlane.xlu0 %961
    %v963 = vmul.f32 %v932, %v306
    %v964 = vmul.f32 %v934, %v306
    %v965 = vmul.f32 %v936, %v306
    %v966 = vmul.f32 %v938, %v306
    %v967 = vmul.f32 %v940, %v306
    %v968 = vmul.f32 %v942, %v306
    %v969 = vmul.f32 %v944, %v306
    %v970 = vmul.f32 %v946, %v306
    %v971 = vmul.f32 %v948, %v306
    %v972 = vmul.f32 %v950, %v306
    %v973 = vmul.f32 %v952, %v306
    %v974 = vmul.f32 %v954, %v306
    %v975 = vmul.f32 %v956, %v306
    %v976 = vmul.f32 %v958, %v306
    %v977 = vmul.f32 %v960, %v306
    %v978 = vmul.f32 %v962, %v306
    %v979 = vadd.f32 %v963, 1e-05
    %v980 = vadd.f32 %v964, 1e-05
    %v981 = vadd.f32 %v965, 1e-05
    %v982 = vadd.f32 %v966, 1e-05
    %v983 = vadd.f32 %v967, 1e-05
    %v984 = vadd.f32 %v968, 1e-05
    %v985 = vadd.f32 %v969, 1e-05
    %v986 = vadd.f32 %v970, 1e-05
    %v987 = vadd.f32 %v971, 1e-05
    %v988 = vadd.f32 %v972, 1e-05
    %v989 = vadd.f32 %v973, 1e-05
    %v990 = vadd.f32 %v974, 1e-05
    %v991 = vadd.f32 %v975, 1e-05
    %v992 = vadd.f32 %v976, 1e-05
    %v993 = vadd.f32 %v977, 1e-05
    %v994 = vadd.f32 %v978, 1e-05
    %v995 = vrsqrt.pop %v979
    %v996 = vrsqrt.pop %v980
    %v997 = vrsqrt.pop %v981
    %v998 = vrsqrt.pop %v982
    %v999 = vrsqrt.pop %v983
    %v1000 = vrsqrt.pop %v984
    %v1001 = vrsqrt.pop %v985
    %v1002 = vrsqrt.pop %v986
    %v1003 = vrsqrt.pop %v987
    %v1004 = vrsqrt.pop %v988
    %v1005 = vrsqrt.pop %v989
    %v1006 = vrsqrt.pop %v990
    %v1007 = vrsqrt.pop %v991
    %v1008 = vrsqrt.pop %v992
    %v1009 = vrsqrt.pop %v993
    %v1010 = vrsqrt.pop %v994
    %v1011 = vmul.f32 %v899, %v995
    %v1012 = vmul.f32 %v900, %v996
    %v1013 = vmul.f32 %v901, %v997
    %v1014 = vmul.f32 %v902, %v998
    %v1015 = vmul.f32 %v903, %v999
    %v1016 = vmul.f32 %v904, %v1000
    %v1017 = vmul.f32 %v905, %v1001
    %v1018 = vmul.f32 %v906, %v1002
    %v1019 = vmul.f32 %v907, %v1003
    %v1020 = vmul.f32 %v908, %v1004
    %v1021 = vmul.f32 %v909, %v1005
    %v1022 = vmul.f32 %v910, %v1006
    %v1023 = vmul.f32 %v911, %v1007
    %v1024 = vmul.f32 %v912, %v1008
    %v1025 = vmul.f32 %v913, %v1009
    %v1026 = vmul.f32 %v914, %v1010
    %v1028 = vlaneseq
    %v1029 = vshrl.u32 %v1028, 7
    %v1030 = vsub.s32 0, %v1029
    %v1031 = vrot.slane %v849, %v1030
    %v1033 = vmul.f32 %v1011, %v1031
    %v1034 = vmul.f32 %v1012, %v1031
    %v1035 = vmul.f32 %v1013, %v1031
    %v1036 = vmul.f32 %v1014, %v1031
    %v1037 = vmul.f32 %v1015, %v1031
    %v1038 = vmul.f32 %v1016, %v1031
    %v1039 = vmul.f32 %v1017, %v1031
    %v1040 = vmul.f32 %v1018, %v1031
    %v1041 = vmul.f32 %v1019, %v1031
    %v1042 = vmul.f32 %v1020, %v1031
    %v1043 = vmul.f32 %v1021, %v1031
    %v1044 = vmul.f32 %v1022, %v1031
    %v1045 = vmul.f32 %v1023, %v1031
    %v1046 = vmul.f32 %v1024, %v1031
    %v1047 = vmul.f32 %v1025, %v1031
    %v1048 = vmul.f32 %v1026, %v1031
    %v1050 = vlaneseq
    %v1051 = vshrl.u32 %v1050, 7
    %v1052 = vsub.s32 0, %v1051
    %v1053 = vrot.slane %v850, %v1052
    %v1055 = vadd.f32 %v1033, %v1053
    %v1056 = vadd.f32 %v1034, %v1053
    %v1057 = vadd.f32 %v1035, %v1053
    %v1058 = vadd.f32 %v1036, %v1053
    %v1059 = vadd.f32 %v1037, %v1053
    %v1060 = vadd.f32 %v1038, %v1053
    %v1061 = vadd.f32 %v1039, %v1053
    %v1062 = vadd.f32 %v1040, %v1053
    %v1063 = vadd.f32 %v1041, %v1053
    %v1064 = vadd.f32 %v1042, %v1053
    %v1065 = vadd.f32 %v1043, %v1053
    %v1066 = vadd.f32 %v1044, %v1053
    %v1067 = vadd.f32 %v1045, %v1053
    %v1068 = vadd.f32 %v1046, %v1053
    %v1069 = vadd.f32 %v1047, %v1053
    %v1070 = vadd.f32 %v1048, %v1053
    %s1071 = scalar_lea.vmem [#allocation8], 128
    %v1072 = vld [vmem:[%s1071] sm:$0xff]
    %v1073 = vld [vmem:[%s1071 + $0x8] sm:$0xff]
    %v1074 = vld [vmem:[%s1071 + $0x10] sm:$0xff]
    %v1075 = vld [vmem:[%s1071 + $0x18] sm:$0xff]
    %v1076 = vld [vmem:[%s1071 + $0x20] sm:$0xff]
    %v1077 = vld [vmem:[%s1071 + $0x28] sm:$0xff]
    %v1078 = vld [vmem:[%s1071 + $0x30] sm:$0xff]
    %v1079 = vld [vmem:[%s1071 + $0x38] sm:$0xff]
    %v1080 = vld [vmem:[%s1071 + $0x40] sm:$0xff]
    %v1081 = vld [vmem:[%s1071 + $0x48] sm:$0xff]
    %v1082 = vld [vmem:[%s1071 + $0x50] sm:$0xff]
    %v1083 = vld [vmem:[%s1071 + $0x58] sm:$0xff]
    %v1084 = vld [vmem:[%s1071 + $0x60] sm:$0xff]
    %v1085 = vld [vmem:[%s1071 + $0x68] sm:$0xff]
    %v1086 = vld [vmem:[%s1071 + $0x70] sm:$0xff]
    %v1087 = vld [vmem:[%s1071 + $0x78] sm:$0xff]
    %s1088 = scalar_lea.vmem %s6, 1
    %v1089 = vld [vmem:[%s1088] sm:$0x1]
    %v1091 = vlaneseq
    %v1092 = vshrl.u32 %v1091, 7
    %v1093 = vsub.s32 0, %v1092
    %v1094 = vrot.slane %v1089, %v1093
    %1096 = vmatprep.subr.mxu0 0.0
    %1097 = vmatpush1.msra.mxu0 %v1072
    %1098 = vmatprep.subr.mxu0 0.0
    %1099 = vmatpush1.msra.mxu0 %v1073
    %1100 = vmatprep.subr.mxu0 0.0
    %1101 = vmatpush1.msra.mxu0 %v1074
    %1102 = vmatprep.subr.mxu0 0.0
    %1103 = vmatpush1.msra.mxu0 %v1075
    %1104 = vmatprep.subr.mxu0 0.0
    %1105 = vmatpush1.msra.mxu0 %v1076
    %1106 = vmatprep.subr.mxu0 0.0
    %1107 = vmatpush1.msra.mxu0 %v1077
    %1108 = vmatprep.subr.mxu0 0.0
    %1109 = vmatpush1.msra.mxu0 %v1078
    %1110 = vmatprep.subr.mxu0 0.0
    %1111 = vmatpush1.msra.mxu0 %v1079
    %1112 = vmatprep.subr.mxu0 0.0
    %1113 = vmatpush1.msra.mxu0 %v1080
    %1114 = vmatprep.subr.mxu0 0.0
    %1115 = vmatpush1.msra.mxu0 %v1081
    %1116 = vmatprep.subr.mxu0 0.0
    %1117 = vmatpush1.msra.mxu0 %v1082
    %1118 = vmatprep.subr.mxu0 0.0
    %1119 = vmatpush1.msra.mxu0 %v1083
    %1120 = vmatprep.subr.mxu0 0.0
    %1121 = vmatpush1.msra.mxu0 %v1084
    %1122 = vmatprep.subr.mxu0 0.0
    %1123 = vmatpush1.msra.mxu0 %v1085
    %1124 = vmatprep.subr.mxu0 0.0
    %1125 = vmatpush1.msra.mxu0 %v1086
    %1126 = vmatprep.subr.mxu0 0.0
    %1127 = vmatpush1.msra.mxu0 %v1087
    %1128 = vmatprep.subr.mxu0 0.0
    %1129 = vmatpush1.msra.mxu0 0.0
    %1130 = vmatprep.subr.mxu0 0.0
    %1131 = vmatpush1.msra.mxu0 0.0
    %1132 = vmatprep.subr.mxu0 0.0
    %1133 = vmatpush1.msra.mxu0 0.0
    %1134 = vmatprep.subr.mxu0 0.0
    %1135 = vmatpush1.msra.mxu0 0.0
    %1136 = vmatprep.subr.mxu0 0.0
    %1137 = vmatpush1.msra.mxu0 0.0
    %1138 = vmatprep.subr.mxu0 0.0
    %1139 = vmatpush1.msra.mxu0 0.0
    %1140 = vmatprep.subr.mxu0 0.0
    %1141 = vmatpush1.msra.mxu0 0.0
    %1142 = vmatprep.subr.mxu0 0.0
    %1143 = vmatpush1.msra.mxu0 0.0
    %1144 = vmatprep.subr.mxu0 0.0
    %1145 = vmatpush1.msra.mxu0 0.0
    %1146 = vmatprep.subr.mxu0 0.0
    %1147 = vmatpush1.msra.mxu0 0.0
    %1148 = vmatprep.subr.mxu0 0.0
    %1149 = vmatpush1.msra.mxu0 0.0
    %1150 = vmatprep.subr.mxu0 0.0
    %1151 = vmatpush1.msra.mxu0 0.0
    %1152 = vmatprep.subr.mxu0 0.0
    %1153 = vmatpush1.msra.mxu0 0.0
    %1154 = vmatprep.subr.mxu0 0.0
    %1155 = vmatpush1.msra.mxu0 0.0
    %1156 = vmatprep.subr.mxu0 0.0
    %1157 = vmatpush1.msra.mxu0 0.0
    %1158 = vmatprep.subr.mxu0 0.0
    %1159 = vmatpush1.msra.mxu0 0.0
    %1160 = vmatprep.mubr.f32.mxu0 0.0
    %1161 = vmatmul.mubr.f32.gmra.mrb[0].mxu0 %v1055
    %v1162 = vpop.f32.mrb[0].mxu0
    %v1163 = vadd.f32 %v1094, %v1162
    %v1164 = vpop.f32.mrb[0].mxu0
    %1165 = vmatprep.mubr.f32.mxu0 0.0
    %1166 = vmatmul.mubr.f32.gmra.mrb[0].mxu0 %v1056
    %v1167 = vpop.f32.mrb[0].mxu0
    %v1168 = vadd.f32 %v1094, %v1167
    %v1169 = vpop.f32.mrb[0].mxu0
    %1170 = vmatprep.mubr.f32.mxu0 0.0
    %1171 = vmatmul.mubr.f32.gmra.mrb[0].mxu0 %v1057
    %v1172 = vpop.f32.mrb[0].mxu0
    %v1173 = vadd.f32 %v1094, %v1172
    %v1174 = vpop.f32.mrb[0].mxu0
    %1175 = vmatprep.mubr.f32.mxu0 0.0
    %1176 = vmatmul.mubr.f32.gmra.mrb[0].mxu0 %v1058
    %v1177 = vpop.f32.mrb[0].mxu0
    %v1178 = vadd.f32 %v1094, %v1177
    %v1179 = vpop.f32.mrb[0].mxu0
    %1180 = vmatprep.mubr.f32.mxu0 0.0
    %1181 = vmatmul.mubr.f32.gmra.mrb[0].mxu0 %v1059
    %v1182 = vpop.f32.mrb[0].mxu0
    %v1183 = vadd.f32 %v1094, %v1182
    %v1184 = vpop.f32.mrb[0].mxu0
    %1185 = vmatprep.mubr.f32.mxu0 0.0
    %1186 = vmatmul.mubr.f32.gmra.mrb[0].mxu0 %v1060
    %v1187 = vpop.f32.mrb[0].mxu0
    %v1188 = vadd.f32 %v1094, %v1187
    %v1189 = vpop.f32.mrb[0].mxu0
    %1190 = vmatprep.mubr.f32.mxu0 0.0
    %1191 = vmatmul.mubr.f32.gmra.mrb[0].mxu0 %v1061
    %v1192 = vpop.f32.mrb[0].mxu0
    %v1193 = vadd.f32 %v1094, %v1192
    %v1194 = vpop.f32.mrb[0].mxu0
    %1195 = vmatprep.mubr.f32.mxu0 0.0
    %1196 = vmatmul.mubr.f32.gmra.mrb[0].mxu0 %v1062
    %v1197 = vpop.f32.mrb[0].mxu0
    %v1198 = vadd.f32 %v1094, %v1197
    %v1199 = vpop.f32.mrb[0].mxu0
    %1200 = vmatprep.mubr.f32.mxu0 0.0
    %1201 = vmatmul.mubr.f32.gmra.mrb[0].mxu0 %v1063
    %v1202 = vpop.f32.mrb[0].mxu0
    %v1203 = vadd.f32 %v1094, %v1202
    %v1204 = vpop.f32.mrb[0].mxu0
    %1205 = vmatprep.mubr.f32.mxu0 0.0
    %1206 = vmatmul.mubr.f32.gmra.mrb[0].mxu0 %v1064
    %v1207 = vpop.f32.mrb[0].mxu0
    %v1208 = vadd.f32 %v1094, %v1207
    %v1209 = vpop.f32.mrb[0].mxu0
    %1210 = vmatprep.mubr.f32.mxu0 0.0
    %1211 = vmatmul.mubr.f32.gmra.mrb[0].mxu0 %v1065
    %v1212 = vpop.f32.mrb[0].mxu0
    %v1213 = vadd.f32 %v1094, %v1212
    %v1214 = vpop.f32.mrb[0].mxu0
    %1215 = vmatprep.mubr.f32.mxu0 0.0
    %1216 = vmatmul.mubr.f32.gmra.mrb[0].mxu0 %v1066
    %v1217 = vpop.f32.mrb[0].mxu0
    %v1218 = vadd.f32 %v1094, %v1217
    %v1219 = vpop.f32.mrb[0].mxu0
    %1220 = vmatprep.mubr.f32.mxu0 0.0
    %1221 = vmatmul.mubr.f32.gmra.mrb[0].mxu0 %v1067
    %v1222 = vpop.f32.mrb[0].mxu0
    %v1223 = vadd.f32 %v1094, %v1222
    %v1224 = vpop.f32.mrb[0].mxu0
    %1225 = vmatprep.mubr.f32.mxu0 0.0
    %1226 = vmatmul.mubr.f32.gmra.mrb[0].mxu0 %v1068
    %v1227 = vpop.f32.mrb[0].mxu0
    %v1228 = vadd.f32 %v1094, %v1227
    %v1229 = vpop.f32.mrb[0].mxu0
    %1230 = vmatprep.mubr.f32.mxu0 0.0
    %1231 = vmatmul.mubr.f32.gmra.mrb[0].mxu0 %v1069
    %v1232 = vpop.f32.mrb[0].mxu0
    %v1233 = vadd.f32 %v1094, %v1232
    %v1234 = vpop.f32.mrb[0].mxu0
    %1235 = vmatprep.mubr.f32.mxu0 0.0
    %1236 = vmatmul.mubr.f32.gmra.mrb[0].mxu0 %v1070
    %v1237 = vpop.f32.mrb[0].mxu0
    %v1238 = vadd.f32 %v1094, %v1237
    %v1239 = vpop.f32.mrb[0].mxu0
    %1240 = vdwg.mxu0
    %s1241 = scalar_lea.vmem %s7, 1
    %v1242 = vld [vmem:[%s1241] sm:$0x1]
    %s1243 = scalar_lea.vmem %s8, 1
    %v1244 = vld [vmem:[%s1243] sm:$0x1]
    %1245 = vadd.xlane.f32.xlu0 %v1163
    %v1246 = vpop.xlane.xlu0 %1245
    %1247 = vadd.xlane.f32.xlu0 %v1168
    %v1248 = vpop.xlane.xlu0 %1247
    %1249 = vadd.xlane.f32.xlu0 %v1173
    %v1250 = vpop.xlane.xlu0 %1249
    %1251 = vadd.xlane.f32.xlu0 %v1178
    %v1252 = vpop.xlane.xlu0 %1251
    %1253 = vadd.xlane.f32.xlu0 %v1183
    %v1254 = vpop.xlane.xlu0 %1253
    %1255 = vadd.xlane.f32.xlu0 %v1188
    %v1256 = vpop.xlane.xlu0 %1255
    %1257 = vadd.xlane.f32.xlu0 %v1193
    %v1258 = vpop.xlane.xlu0 %1257
    %1259 = vadd.xlane.f32.xlu0 %v1198
    %v1260 = vpop.xlane.xlu0 %1259
    %1261 = vadd.xlane.f32.xlu0 %v1203
    %v1262 = vpop.xlane.xlu0 %1261
    %1263 = vadd.xlane.f32.xlu0 %v1208
    %v1264 = vpop.xlane.xlu0 %1263
    %1265 = vadd.xlane.f32.xlu0 %v1213
    %v1266 = vpop.xlane.xlu0 %1265
    %1267 = vadd.xlane.f32.xlu0 %v1218
    %v1268 = vpop.xlane.xlu0 %1267
    %1269 = vadd.xlane.f32.xlu0 %v1223
    %v1270 = vpop.xlane.xlu0 %1269
    %1271 = vadd.xlane.f32.xlu0 %v1228
    %v1272 = vpop.xlane.xlu0 %1271
    %1273 = vadd.xlane.f32.xlu0 %v1233
    %v1274 = vpop.xlane.xlu0 %1273
    %1275 = vadd.xlane.f32.xlu0 %v1238
    %v1276 = vpop.xlane.xlu0 %1275
    %v1277 = vmul.f32 %v1246, %v306
    %v1278 = vmul.f32 %v1248, %v306
    %v1279 = vmul.f32 %v1250, %v306
    %v1280 = vmul.f32 %v1252, %v306
    %v1281 = vmul.f32 %v1254, %v306
    %v1282 = vmul.f32 %v1256, %v306
    %v1283 = vmul.f32 %v1258, %v306
    %v1284 = vmul.f32 %v1260, %v306
    %v1285 = vmul.f32 %v1262, %v306
    %v1286 = vmul.f32 %v1264, %v306
    %v1287 = vmul.f32 %v1266, %v306
    %v1288 = vmul.f32 %v1268, %v306
    %v1289 = vmul.f32 %v1270, %v306
    %v1290 = vmul.f32 %v1272, %v306
    %v1291 = vmul.f32 %v1274, %v306
    %v1292 = vmul.f32 %v1276, %v306
    %v1293 = vsub.f32 %v1163, %v1277
    %v1294 = vsub.f32 %v1168, %v1278
    %v1295 = vsub.f32 %v1173, %v1279
    %v1296 = vsub.f32 %v1178, %v1280
    %v1297 = vsub.f32 %v1183, %v1281
    %v1298 = vsub.f32 %v1188, %v1282
    %v1299 = vsub.f32 %v1193, %v1283
    %v1300 = vsub.f32 %v1198, %v1284
    %v1301 = vsub.f32 %v1203, %v1285
    %v1302 = vsub.f32 %v1208, %v1286
    %v1303 = vsub.f32 %v1213, %v1287
    %v1304 = vsub.f32 %v1218, %v1288
    %v1305 = vsub.f32 %v1223, %v1289
    %v1306 = vsub.f32 %v1228, %v1290
    %v1307 = vsub.f32 %v1233, %v1291
    %v1308 = vsub.f32 %v1238, %v1292
    %v1309 = vmul.f32 %v1293, %v1293
    %v1310 = vmul.f32 %v1294, %v1294
    %v1311 = vmul.f32 %v1295, %v1295
    %v1312 = vmul.f32 %v1296, %v1296
    %v1313 = vmul.f32 %v1297, %v1297
    %v1314 = vmul.f32 %v1298, %v1298
    %v1315 = vmul.f32 %v1299, %v1299
    %v1316 = vmul.f32 %v1300, %v1300
    %v1317 = vmul.f32 %v1301, %v1301
    %v1318 = vmul.f32 %v1302, %v1302
    %v1319 = vmul.f32 %v1303, %v1303
    %v1320 = vmul.f32 %v1304, %v1304
    %v1321 = vmul.f32 %v1305, %v1305
    %v1322 = vmul.f32 %v1306, %v1306
    %v1323 = vmul.f32 %v1307, %v1307
    %v1324 = vmul.f32 %v1308, %v1308
    %1325 = vadd.xlane.f32.xlu0 %v1309
    %v1326 = vpop.xlane.xlu0 %1325
    %1327 = vadd.xlane.f32.xlu0 %v1310
    %v1328 = vpop.xlane.xlu0 %1327
    %1329 = vadd.xlane.f32.xlu0 %v1311
    %v1330 = vpop.xlane.xlu0 %1329
    %1331 = vadd.xlane.f32.xlu0 %v1312
    %v1332 = vpop.xlane.xlu0 %1331
    %1333 = vadd.xlane.f32.xlu0 %v1313
    %v1334 = vpop.xlane.xlu0 %1333
    %1335 = vadd.xlane.f32.xlu0 %v1314
    %v1336 = vpop.xlane.xlu0 %1335
    %1337 = vadd.xlane.f32.xlu0 %v1315
    %v1338 = vpop.xlane.xlu0 %1337
    %1339 = vadd.xlane.f32.xlu0 %v1316
    %v1340 = vpop.xlane.xlu0 %1339
    %1341 = vadd.xlane.f32.xlu0 %v1317
    %v1342 = vpop.xlane.xlu0 %1341
    %1343 = vadd.xlane.f32.xlu0 %v1318
    %v1344 = vpop.xlane.xlu0 %1343
    %1345 = vadd.xlane.f32.xlu0 %v1319
    %v1346 = vpop.xlane.xlu0 %1345
    %1347 = vadd.xlane.f32.xlu0 %v1320
    %v1348 = vpop.xlane.xlu0 %1347
    %1349 = vadd.xlane.f32.xlu0 %v1321
    %v1350 = vpop.xlane.xlu0 %1349
    %1351 = vadd.xlane.f32.xlu0 %v1322
    %v1352 = vpop.xlane.xlu0 %1351
    %1353 = vadd.xlane.f32.xlu0 %v1323
    %v1354 = vpop.xlane.xlu0 %1353
    %1355 = vadd.xlane.f32.xlu0 %v1324
    %v1356 = vpop.xlane.xlu0 %1355
    %v1357 = vmul.f32 %v1326, %v306
    %v1358 = vmul.f32 %v1328, %v306
    %v1359 = vmul.f32 %v1330, %v306
    %v1360 = vmul.f32 %v1332, %v306
    %v1361 = vmul.f32 %v1334, %v306
    %v1362 = vmul.f32 %v1336, %v306
    %v1363 = vmul.f32 %v1338, %v306
    %v1364 = vmul.f32 %v1340, %v306
    %v1365 = vmul.f32 %v1342, %v306
    %v1366 = vmul.f32 %v1344, %v306
    %v1367 = vmul.f32 %v1346, %v306
    %v1368 = vmul.f32 %v1348, %v306
    %v1369 = vmul.f32 %v1350, %v306
    %v1370 = vmul.f32 %v1352, %v306
    %v1371 = vmul.f32 %v1354, %v306
    %v1372 = vmul.f32 %v1356, %v306
    %v1373 = vadd.f32 %v1357, 1e-05
    %v1374 = vadd.f32 %v1358, 1e-05
    %v1375 = vadd.f32 %v1359, 1e-05
    %v1376 = vadd.f32 %v1360, 1e-05
    %v1377 = vadd.f32 %v1361, 1e-05
    %v1378 = vadd.f32 %v1362, 1e-05
    %v1379 = vadd.f32 %v1363, 1e-05
    %v1380 = vadd.f32 %v1364, 1e-05
    %v1381 = vadd.f32 %v1365, 1e-05
    %v1382 = vadd.f32 %v1366, 1e-05
    %v1383 = vadd.f32 %v1367, 1e-05
    %v1384 = vadd.f32 %v1368, 1e-05
    %v1385 = vadd.f32 %v1369, 1e-05
    %v1386 = vadd.f32 %v1370, 1e-05
    %v1387 = vadd.f32 %v1371, 1e-05
    %v1388 = vadd.f32 %v1372, 1e-05
    %v1389 = vrsqrt.pop %v1373
    %v1390 = vrsqrt.pop %v1374
    %v1391 = vrsqrt.pop %v1375
    %v1392 = vrsqrt.pop %v1376
    %v1393 = vrsqrt.pop %v1377
    %v1394 = vrsqrt.pop %v1378
    %v1395 = vrsqrt.pop %v1379
    %v1396 = vrsqrt.pop %v1380
    %v1397 = vrsqrt.pop %v1381
    %v1398 = vrsqrt.pop %v1382
    %v1399 = vrsqrt.pop %v1383
    %v1400 = vrsqrt.pop %v1384
    %v1401 = vrsqrt.pop %v1385
    %v1402 = vrsqrt.pop %v1386
    %v1403 = vrsqrt.pop %v1387
    %v1404 = vrsqrt.pop %v1388
    %v1405 = vmul.f32 %v1293, %v1389
    %v1406 = vmul.f32 %v1294, %v1390
    %v1407 = vmul.f32 %v1295, %v1391
    %v1408 = vmul.f32 %v1296, %v1392
    %v1409 = vmul.f32 %v1297, %v1393
    %v1410 = vmul.f32 %v1298, %v1394
    %v1411 = vmul.f32 %v1299, %v1395
    %v1412 = vmul.f32 %v1300, %v1396
    %v1413 = vmul.f32 %v1301, %v1397
    %v1414 = vmul.f32 %v1302, %v1398
    %v1415 = vmul.f32 %v1303, %v1399
    %v1416 = vmul.f32 %v1304, %v1400
    %v1417 = vmul.f32 %v1305, %v1401
    %v1418 = vmul.f32 %v1306, %v1402
    %v1419 = vmul.f32 %v1307, %v1403
    %v1420 = vmul.f32 %v1308, %v1404
    %v1422 = vlaneseq
    %v1423 = vshrl.u32 %v1422, 7
    %v1424 = vsub.s32 0, %v1423
    %v1425 = vrot.slane %v1242, %v1424
    %v1427 = vmul.f32 %v1405, %v1425
    %v1428 = vmul.f32 %v1406, %v1425
    %v1429 = vmul.f32 %v1407, %v1425
    %v1430 = vmul.f32 %v1408, %v1425
    %v1431 = vmul.f32 %v1409, %v1425
    %v1432 = vmul.f32 %v1410, %v1425
    %v1433 = vmul.f32 %v1411, %v1425
    %v1434 = vmul.f32 %v1412, %v1425
    %v1435 = vmul.f32 %v1413, %v1425
    %v1436 = vmul.f32 %v1414, %v1425
    %v1437 = vmul.f32 %v1415, %v1425
    %v1438 = vmul.f32 %v1416, %v1425
    %v1439 = vmul.f32 %v1417, %v1425
    %v1440 = vmul.f32 %v1418, %v1425
    %v1441 = vmul.f32 %v1419, %v1425
    %v1442 = vmul.f32 %v1420, %v1425
    %v1444 = vlaneseq
    %v1445 = vshrl.u32 %v1444, 7
    %v1446 = vsub.s32 0, %v1445
    %v1447 = vrot.slane %v1244, %v1446
    %v1449 = vadd.f32 %v1427, %v1447
    %v1450 = vadd.f32 %v1428, %v1447
    %v1451 = vadd.f32 %v1429, %v1447
    %v1452 = vadd.f32 %v1430, %v1447
    %v1453 = vadd.f32 %v1431, %v1447
    %v1454 = vadd.f32 %v1432, %v1447
    %v1455 = vadd.f32 %v1433, %v1447
    %v1456 = vadd.f32 %v1434, %v1447
    %v1457 = vadd.f32 %v1435, %v1447
    %v1458 = vadd.f32 %v1436, %v1447
    %v1459 = vadd.f32 %v1437, %v1447
    %v1460 = vadd.f32 %v1438, %v1447
    %v1461 = vadd.f32 %v1439, %v1447
    %v1462 = vadd.f32 %v1440, %v1447
    %v1463 = vadd.f32 %v1441, %v1447
    %v1464 = vadd.f32 %v1442, %v1447
    %v1465 = vmax.f32 %v1449, 0.0
    %v1466 = vmax.f32 %v1450, 0.0
    %v1467 = vmax.f32 %v1451, 0.0
    %v1468 = vmax.f32 %v1452, 0.0
    %v1469 = vmax.f32 %v1453, 0.0
    %v1470 = vmax.f32 %v1454, 0.0
    %v1471 = vmax.f32 %v1455, 0.0
    %v1472 = vmax.f32 %v1456, 0.0
    %v1473 = vmax.f32 %v1457, 0.0
    %v1474 = vmax.f32 %v1458, 0.0
    %v1475 = vmax.f32 %v1459, 0.0
    %v1476 = vmax.f32 %v1460, 0.0
    %v1477 = vmax.f32 %v1461, 0.0
    %v1478 = vmax.f32 %v1462, 0.0
    %v1479 = vmax.f32 %v1463, 0.0
    %v1480 = vmax.f32 %v1464, 0.0
    %v1481 = vadd.f32 %v495, %v1465
    %v1482 = vadd.f32 %v496, %v1466
    %v1483 = vadd.f32 %v497, %v1467
    %v1484 = vadd.f32 %v498, %v1468
    %v1485 = vadd.f32 %v499, %v1469
    %v1486 = vadd.f32 %v500, %v1470
    %v1487 = vadd.f32 %v501, %v1471
    %v1488 = vadd.f32 %v502, %v1472
    %v1489 = vadd.f32 %v503, %v1473
    %v1490 = vadd.f32 %v504, %v1474
    %v1491 = vadd.f32 %v505, %v1475
    %v1492 = vadd.f32 %v506, %v1476
    %v1493 = vadd.f32 %v507, %v1477
    %v1494 = vadd.f32 %v508, %v1478
    %v1495 = vadd.f32 %v509, %v1479
    %v1496 = vadd.f32 %v510, %v1480
    %s1497 = scalar_lea.vmem [#allocation7], 128
    %v1498 = vld [vmem:[%s1497] sm:$0xff]
    %v1499 = vld [vmem:[%s1497 + $0x8] sm:$0xff]
    %v1500 = vld [vmem:[%s1497 + $0x10] sm:$0xff]
    %v1501 = vld [vmem:[%s1497 + $0x18] sm:$0xff]
    %v1502 = vld [vmem:[%s1497 + $0x20] sm:$0xff]
    %v1503 = vld [vmem:[%s1497 + $0x28] sm:$0xff]
    %v1504 = vld [vmem:[%s1497 + $0x30] sm:$0xff]
    %v1505 = vld [vmem:[%s1497 + $0x38] sm:$0xff]
    %v1506 = vld [vmem:[%s1497 + $0x40] sm:$0xff]
    %v1507 = vld [vmem:[%s1497 + $0x48] sm:$0xff]
    %v1508 = vld [vmem:[%s1497 + $0x50] sm:$0xff]
    %v1509 = vld [vmem:[%s1497 + $0x58] sm:$0xff]
    %v1510 = vld [vmem:[%s1497 + $0x60] sm:$0xff]
    %v1511 = vld [vmem:[%s1497 + $0x68] sm:$0xff]
    %v1512 = vld [vmem:[%s1497 + $0x70] sm:$0xff]
    %v1513 = vld [vmem:[%s1497 + $0x78] sm:$0xff]
    %1514 = vmatprep.subr.mxu0 0.0
    %1515 = vmatpush1.msra.mxu0 %v1498
    %1516 = vmatprep.subr.mxu0 0.0
    %1517 = vmatpush1.msra.mxu0 %v1499
    %1518 = vmatprep.subr.mxu0 0.0
    %1519 = vmatpush1.msra.mxu0 %v1500
    %1520 = vmatprep.subr.mxu0 0.0
    %1521 = vmatpush1.msra.mxu0 %v1501
    %1522 = vmatprep.subr.mxu0 0.0
    %1523 = vmatpush1.msra.mxu0 %v1502
    %1524 = vmatprep.subr.mxu0 0.0
    %1525 = vmatpush1.msra.mxu0 %v1503
    %1526 = vmatprep.subr.mxu0 0.0
    %1527 = vmatpush1.msra.mxu0 %v1504
    %1528 = vmatprep.subr.mxu0 0.0
    %1529 = vmatpush1.msra.mxu0 %v1505
    %1530 = vmatprep.subr.mxu0 0.0
    %1531 = vmatpush1.msra.mxu0 %v1506
    %1532 = vmatprep.subr.mxu0 0.0
    %1533 = vmatpush1.msra.mxu0 %v1507
    %1534 = vmatprep.subr.mxu0 0.0
    %1535 = vmatpush1.msra.mxu0 %v1508
    %1536 = vmatprep.subr.mxu0 0.0
    %1537 = vmatpush1.msra.mxu0 %v1509
    %1538 = vmatprep.subr.mxu0 0.0
    %1539 = vmatpush1.msra.mxu0 %v1510
    %1540 = vmatprep.subr.mxu0 0.0
    %1541 = vmatpush1.msra.mxu0 %v1511
    %1542 = vmatprep.subr.mxu0 0.0
    %1543 = vmatpush1.msra.mxu0 %v1512
    %1544 = vmatprep.subr.mxu0 0.0
    %1545 = vmatpush1.msra.mxu0 %v1513
    %1546 = vmatprep.subr.mxu0 0.0
    %1547 = vmatpush1.msra.mxu0 0.0
    %1548 = vmatprep.subr.mxu0 0.0
    %1549 = vmatpush1.msra.mxu0 0.0
    %1550 = vmatprep.subr.mxu0 0.0
    %1551 = vmatpush1.msra.mxu0 0.0
    %1552 = vmatprep.subr.mxu0 0.0
    %1553 = vmatpush1.msra.mxu0 0.0
    %1554 = vmatprep.subr.mxu0 0.0
    %1555 = vmatpush1.msra.mxu0 0.0
    %1556 = vmatprep.subr.mxu0 0.0
    %1557 = vmatpush1.msra.mxu0 0.0
    %1558 = vmatprep.subr.mxu0 0.0
    %1559 = vmatpush1.msra.mxu0 0.0
    %1560 = vmatprep.subr.mxu0 0.0
    %1561 = vmatpush1.msra.mxu0 0.0
    %1562 = vmatprep.subr.mxu0 0.0
    %1563 = vmatpush1.msra.mxu0 0.0
    %1564 = vmatprep.subr.mxu0 0.0
    %1565 = vmatpush1.msra.mxu0 0.0
    %1566 = vmatprep.subr.mxu0 0.0
    %1567 = vmatpush1.msra.mxu0 0.0
    %1568 = vmatprep.subr.mxu0 0.0
    %1569 = vmatpush1.msra.mxu0 0.0
    %1570 = vmatprep.subr.mxu0 0.0
    %1571 = vmatpush1.msra.mxu0 0.0
    %1572 = vmatprep.subr.mxu0 0.0
    %1573 = vmatpush1.msra.mxu0 0.0
    %1574 = vmatprep.subr.mxu0 0.0
    %1575 = vmatpush1.msra.mxu0 0.0
    %1576 = vmatprep.subr.mxu0 0.0
    %1577 = vmatpush1.msra.mxu0 0.0
    %1578 = vmatprep.mubr.f32.mxu0 0.0
    %1579 = vmatmul.mubr.f32.gmra.mrb[0].mxu0 %v1055
    %v1580 = vpop.f32.mrb[0].mxu0
    %v1581 = vadd.f32 0.0, %v1580
    %v1582 = vpop.f32.mrb[0].mxu0
    %1583 = vmatprep.mubr.f32.mxu0 0.0
    %1584 = vmatmul.mubr.f32.gmra.mrb[0].mxu0 %v1056
    %v1585 = vpop.f32.mrb[0].mxu0
    %v1586 = vadd.f32 0.0, %v1585
    %v1587 = vpop.f32.mrb[0].mxu0
    %1588 = vmatprep.mubr.f32.mxu0 0.0
    %1589 = vmatmul.mubr.f32.gmra.mrb[0].mxu0 %v1057
    %v1590 = vpop.f32.mrb[0].mxu0
    %v1591 = vadd.f32 0.0, %v1590
    %v1592 = vpop.f32.mrb[0].mxu0
    %1593 = vmatprep.mubr.f32.mxu0 0.0
    %1594 = vmatmul.mubr.f32.gmra.mrb[0].mxu0 %v1058
    %v1595 = vpop.f32.mrb[0].mxu0
    %v1596 = vadd.f32 0.0, %v1595
    %v1597 = vpop.f32.mrb[0].mxu0
    %1598 = vmatprep.mubr.f32.mxu0 0.0
    %1599 = vmatmul.mubr.f32.gmra.mrb[0].mxu0 %v1059
    %v1600 = vpop.f32.mrb[0].mxu0
    %v1601 = vadd.f32 0.0, %v1600
    %v1602 = vpop.f32.mrb[0].mxu0
    %1603 = vmatprep.mubr.f32.mxu0 0.0
    %1604 = vmatmul.mubr.f32.gmra.mrb[0].mxu0 %v1060
    %v1605 = vpop.f32.mrb[0].mxu0
    %v1606 = vadd.f32 0.0, %v1605
    %v1607 = vpop.f32.mrb[0].mxu0
    %1608 = vmatprep.mubr.f32.mxu0 0.0
    %1609 = vmatmul.mubr.f32.gmra.mrb[0].mxu0 %v1061
    %v1610 = vpop.f32.mrb[0].mxu0
    %v1611 = vadd.f32 0.0, %v1610
    %v1612 = vpop.f32.mrb[0].mxu0
    %1613 = vmatprep.mubr.f32.mxu0 0.0
    %1614 = vmatmul.mubr.f32.gmra.mrb[0].mxu0 %v1062
    %v1615 = vpop.f32.mrb[0].mxu0
    %v1616 = vadd.f32 0.0, %v1615
    %v1617 = vpop.f32.mrb[0].mxu0
    %1618 = vmatprep.mubr.f32.mxu0 0.0
    %1619 = vmatmul.mubr.f32.gmra.mrb[0].mxu0 %v1063
    %v1620 = vpop.f32.mrb[0].mxu0
    %v1621 = vadd.f32 0.0, %v1620
    %v1622 = vpop.f32.mrb[0].mxu0
    %1623 = vmatprep.mubr.f32.mxu0 0.0
    %1624 = vmatmul.mubr.f32.gmra.mrb[0].mxu0 %v1064
    %v1625 = vpop.f32.mrb[0].mxu0
    %v1626 = vadd.f32 0.0, %v1625
    %v1627 = vpop.f32.mrb[0].mxu0
    %1628 = vmatprep.mubr.f32.mxu0 0.0
    %1629 = vmatmul.mubr.f32.gmra.mrb[0].mxu0 %v1065
    %v1630 = vpop.f32.mrb[0].mxu0
    %v1631 = vadd.f32 0.0, %v1630
    %v1632 = vpop.f32.mrb[0].mxu0
    %1633 = vmatprep.mubr.f32.mxu0 0.0
    %1634 = vmatmul.mubr.f32.gmra.mrb[0].mxu0 %v1066
    %v1635 = vpop.f32.mrb[0].mxu0
    %v1636 = vadd.f32 0.0, %v1635
    %v1637 = vpop.f32.mrb[0].mxu0
    %1638 = vmatprep.mubr.f32.mxu0 0.0
    %1639 = vmatmul.mubr.f32.gmra.mrb[0].mxu0 %v1067
    %v1640 = vpop.f32.mrb[0].mxu0
    %v1641 = vadd.f32 0.0, %v1640
    %v1642 = vpop.f32.mrb[0].mxu0
    %1643 = vmatprep.mubr.f32.mxu0 0.0
    %1644 = vmatmul.mubr.f32.gmra.mrb[0].mxu0 %v1068
    %v1645 = vpop.f32.mrb[0].mxu0
    %v1646 = vadd.f32 0.0, %v1645
    %v1647 = vpop.f32.mrb[0].mxu0
    %1648 = vmatprep.mubr.f32.mxu0 0.0
    %1649 = vmatmul.mubr.f32.gmra.mrb[0].mxu0 %v1069
    %v1650 = vpop.f32.mrb[0].mxu0
    %v1651 = vadd.f32 0.0, %v1650
    %v1652 = vpop.f32.mrb[0].mxu0
    %1653 = vmatprep.mubr.f32.mxu0 0.0
    %1654 = vmatmul.mubr.f32.gmra.mrb[0].mxu0 %v1070
    %v1655 = vpop.f32.mrb[0].mxu0
    %v1656 = vadd.f32 0.0, %v1655
    %v1657 = vpop.f32.mrb[0].mxu0
    %1658 = vdwg.mxu0
    %1659 = vmatprep.subr.mxu0 0.0
    %1660 = vmatpush1.msra.mxu0 %v1581
    %1661 = vmatprep.subr.mxu0 0.0
    %1662 = vmatpush1.msra.mxu0 %v1586
    %1663 = vmatprep.subr.mxu0 0.0
    %1664 = vmatpush1.msra.mxu0 %v1591
    %1665 = vmatprep.subr.mxu0 0.0
    %1666 = vmatpush1.msra.mxu0 %v1596
    %1667 = vmatprep.subr.mxu0 0.0
    %1668 = vmatpush1.msra.mxu0 %v1601
    %1669 = vmatprep.subr.mxu0 0.0
    %1670 = vmatpush1.msra.mxu0 %v1606
    %1671 = vmatprep.subr.mxu0 0.0
    %1672 = vmatpush1.msra.mxu0 %v1611
    %1673 = vmatprep.subr.mxu0 0.0
    %1674 = vmatpush1.msra.mxu0 %v1616
    %1675 = vmatprep.subr.mxu0 0.0
    %1676 = vmatpush1.msra.mxu0 %v1621
    %1677 = vmatprep.subr.mxu0 0.0
    %1678 = vmatpush1.msra.mxu0 %v1626
    %1679 = vmatprep.subr.mxu0 0.0
    %1680 = vmatpush1.msra.mxu0 %v1631
    %1681 = vmatprep.subr.mxu0 0.0
    %1682 = vmatpush1.msra.mxu0 %v1636
    %1683 = vmatprep.subr.mxu0 0.0
    %1684 = vmatpush1.msra.mxu0 %v1641
    %1685 = vmatprep.subr.mxu0 0.0
    %1686 = vmatpush1.msra.mxu0 %v1646
    %1687 = vmatprep.subr.mxu0 0.0
    %1688 = vmatpush1.msra.mxu0 %v1651
    %1689 = vmatprep.subr.mxu0 0.0
    %1690 = vmatpush1.msra.mxu0 %v1656
    %1691 = vmatprep.subr.mxu0 0.0
    %1692 = vmatpush1.msra.mxu0 0.0
    %1693 = vmatprep.subr.mxu0 0.0
    %1694 = vmatpush1.msra.mxu0 0.0
    %1695 = vmatprep.subr.mxu0 0.0
    %1696 = vmatpush1.msra.mxu0 0.0
    %1697 = vmatprep.subr.mxu0 0.0
    %1698 = vmatpush1.msra.mxu0 0.0
    %1699 = vmatprep.subr.mxu0 0.0
    %1700 = vmatpush1.msra.mxu0 0.0
    %1701 = vmatprep.subr.mxu0 0.0
    %1702 = vmatpush1.msra.mxu0 0.0
    %1703 = vmatprep.subr.mxu0 0.0
    %1704 = vmatpush1.msra.mxu0 0.0
    %1705 = vmatprep.subr.mxu0 0.0
    %1706 = vmatpush1.msra.mxu0 0.0
    %1707 = vmatprep.subr.mxu0 0.0
    %1708 = vmatpush1.msra.mxu0 0.0
    %1709 = vmatprep.subr.mxu0 0.0
    %1710 = vmatpush1.msra.mxu0 0.0
    %1711 = vmatprep.subr.mxu0 0.0
    %1712 = vmatpush1.msra.mxu0 0.0
    %1713 = vmatprep.subr.mxu0 0.0
    %1714 = vmatpush1.msra.mxu0 0.0
    %1715 = vmatprep.subr.mxu0 0.0
    %1716 = vmatpush1.msra.mxu0 0.0
    %1717 = vmatprep.subr.mxu0 0.0
    %1718 = vmatpush1.msra.mxu0 0.0
    %1719 = vmatprep.subr.mxu0 0.0
    %1720 = vmatpush1.msra.mxu0 0.0
    %1721 = vmatprep.subr.mxu0 0.0
    %1722 = vmatpush1.msra.mxu0 0.0
    %1723 = vmatprep.mubr.f32.mxu0 0.0
    %1724 = vmatmul.mubr.f32.gmra.mrb[0].mxu0 %v672
    %v1725 = vpop.f32.mrb[0].mxu0
    %v1726 = vadd.f32 0.0, %v1725
    %v1727 = vpop.f32.mrb[0].mxu0
    %1728 = vmatprep.mubr.f32.mxu0 0.0
    %1729 = vmatmul.mubr.f32.gmra.mrb[0].mxu0 %v673
    %v1730 = vpop.f32.mrb[0].mxu0
    %v1731 = vadd.f32 0.0, %v1730
    %v1732 = vpop.f32.mrb[0].mxu0
    %1733 = vmatprep.mubr.f32.mxu0 0.0
    %1734 = vmatmul.mubr.f32.gmra.mrb[0].mxu0 %v674
    %v1735 = vpop.f32.mrb[0].mxu0
    %v1736 = vadd.f32 0.0, %v1735
    %v1737 = vpop.f32.mrb[0].mxu0
    %1738 = vmatprep.mubr.f32.mxu0 0.0
    %1739 = vmatmul.mubr.f32.gmra.mrb[0].mxu0 %v675
    %v1740 = vpop.f32.mrb[0].mxu0
    %v1741 = vadd.f32 0.0, %v1740
    %v1742 = vpop.f32.mrb[0].mxu0
    %1743 = vmatprep.mubr.f32.mxu0 0.0
    %1744 = vmatmul.mubr.f32.gmra.mrb[0].mxu0 %v676
    %v1745 = vpop.f32.mrb[0].mxu0
    %v1746 = vadd.f32 0.0, %v1745
    %v1747 = vpop.f32.mrb[0].mxu0
    %1748 = vmatprep.mubr.f32.mxu0 0.0
    %1749 = vmatmul.mubr.f32.gmra.mrb[0].mxu0 %v677
    %v1750 = vpop.f32.mrb[0].mxu0
    %v1751 = vadd.f32 0.0, %v1750
    %v1752 = vpop.f32.mrb[0].mxu0
    %1753 = vmatprep.mubr.f32.mxu0 0.0
    %1754 = vmatmul.mubr.f32.gmra.mrb[0].mxu0 %v678
    %v1755 = vpop.f32.mrb[0].mxu0
    %v1756 = vadd.f32 0.0, %v1755
    %v1757 = vpop.f32.mrb[0].mxu0
    %1758 = vmatprep.mubr.f32.mxu0 0.0
    %1759 = vmatmul.mubr.f32.gmra.mrb[0].mxu0 %v679
    %v1760 = vpop.f32.mrb[0].mxu0
    %v1761 = vadd.f32 0.0, %v1760
    %v1762 = vpop.f32.mrb[0].mxu0
    %1763 = vmatprep.mubr.f32.mxu0 0.0
    %1764 = vmatmul.mubr.f32.gmra.mrb[0].mxu0 %v680
    %v1765 = vpop.f32.mrb[0].mxu0
    %v1766 = vadd.f32 0.0, %v1765
    %v1767 = vpop.f32.mrb[0].mxu0
    %1768 = vmatprep.mubr.f32.mxu0 0.0
    %1769 = vmatmul.mubr.f32.gmra.mrb[0].mxu0 %v681
    %v1770 = vpop.f32.mrb[0].mxu0
    %v1771 = vadd.f32 0.0, %v1770
    %v1772 = vpop.f32.mrb[0].mxu0
    %1773 = vmatprep.mubr.f32.mxu0 0.0
    %1774 = vmatmul.mubr.f32.gmra.mrb[0].mxu0 %v682
    %v1775 = vpop.f32.mrb[0].mxu0
    %v1776 = vadd.f32 0.0, %v1775
    %v1777 = vpop.f32.mrb[0].mxu0
    %1778 = vmatprep.mubr.f32.mxu0 0.0
    %1779 = vmatmul.mubr.f32.gmra.mrb[0].mxu0 %v683
    %v1780 = vpop.f32.mrb[0].mxu0
    %v1781 = vadd.f32 0.0, %v1780
    %v1782 = vpop.f32.mrb[0].mxu0
    %1783 = vmatprep.mubr.f32.mxu0 0.0
    %1784 = vmatmul.mubr.f32.gmra.mrb[0].mxu0 %v684
    %v1785 = vpop.f32.mrb[0].mxu0
    %v1786 = vadd.f32 0.0, %v1785
    %v1787 = vpop.f32.mrb[0].mxu0
    %1788 = vmatprep.mubr.f32.mxu0 0.0
    %1789 = vmatmul.mubr.f32.gmra.mrb[0].mxu0 %v685
    %v1790 = vpop.f32.mrb[0].mxu0
    %v1791 = vadd.f32 0.0, %v1790
    %v1792 = vpop.f32.mrb[0].mxu0
    %1793 = vmatprep.mubr.f32.mxu0 0.0
    %1794 = vmatmul.mubr.f32.gmra.mrb[0].mxu0 %v686
    %v1795 = vpop.f32.mrb[0].mxu0
    %v1796 = vadd.f32 0.0, %v1795
    %v1797 = vpop.f32.mrb[0].mxu0
    %1798 = vmatprep.mubr.f32.mxu0 0.0
    %1799 = vmatmul.mubr.f32.gmra.mrb[0].mxu0 %v687
    %v1800 = vpop.f32.mrb[0].mxu0
    %v1801 = vadd.f32 0.0, %v1800
    %v1802 = vpop.f32.mrb[0].mxu0
    %1803 = vdwg.mxu0
    %v1804 = vadd.f32 %v1055, %v1726
    %v1805 = vadd.f32 %v1056, %v1731
    %v1806 = vadd.f32 %v1057, %v1736
    %v1807 = vadd.f32 %v1058, %v1741
    %v1808 = vadd.f32 %v1059, %v1746
    %v1809 = vadd.f32 %v1060, %v1751
    %v1810 = vadd.f32 %v1061, %v1756
    %v1811 = vadd.f32 %v1062, %v1761
    %v1812 = vadd.f32 %v1063, %v1766
    %v1813 = vadd.f32 %v1064, %v1771
    %v1814 = vadd.f32 %v1065, %v1776
    %v1815 = vadd.f32 %v1066, %v1781
    %v1816 = vadd.f32 %v1067, %v1786
    %v1817 = vadd.f32 %v1068, %v1791
    %v1818 = vadd.f32 %v1069, %v1796
    %v1819 = vadd.f32 %v1070, %v1801
    %s1820 = scalar_lea.vmem %s3, 1
    %v1821 = vld [vmem:[%s1820] sm:$0x1]
    %s1822 = scalar_lea.vmem %s4, 1
    %v1823 = vld [vmem:[%s1822] sm:$0x1]
    %1824 = vadd.xlane.f32.xlu0 %v1804
    %v1825 = vpop.xlane.xlu0 %1824
    %1826 = vadd.xlane.f32.xlu0 %v1805
    %v1827 = vpop.xlane.xlu0 %1826
    %1828 = vadd.xlane.f32.xlu0 %v1806
    %v1829 = vpop.xlane.xlu0 %1828
    %1830 = vadd.xlane.f32.xlu0 %v1807
    %v1831 = vpop.xlane.xlu0 %1830
    %1832 = vadd.xlane.f32.xlu0 %v1808
    %v1833 = vpop.xlane.xlu0 %1832
    %1834 = vadd.xlane.f32.xlu0 %v1809
    %v1835 = vpop.xlane.xlu0 %1834
    %1836 = vadd.xlane.f32.xlu0 %v1810
    %v1837 = vpop.xlane.xlu0 %1836
    %1838 = vadd.xlane.f32.xlu0 %v1811
    %v1839 = vpop.xlane.xlu0 %1838
    %1840 = vadd.xlane.f32.xlu0 %v1812
    %v1841 = vpop.xlane.xlu0 %1840
    %1842 = vadd.xlane.f32.xlu0 %v1813
    %v1843 = vpop.xlane.xlu0 %1842
    %1844 = vadd.xlane.f32.xlu0 %v1814
    %v1845 = vpop.xlane.xlu0 %1844
    %1846 = vadd.xlane.f32.xlu0 %v1815
    %v1847 = vpop.xlane.xlu0 %1846
    %1848 = vadd.xlane.f32.xlu0 %v1816
    %v1849 = vpop.xlane.xlu0 %1848
    %1850 = vadd.xlane.f32.xlu0 %v1817
    %v1851 = vpop.xlane.xlu0 %1850
    %1852 = vadd.xlane.f32.xlu0 %v1818
    %v1853 = vpop.xlane.xlu0 %1852
    %1854 = vadd.xlane.f32.xlu0 %v1819
    %v1855 = vpop.xlane.xlu0 %1854
    %v1856 = vmul.f32 %v1825, %v306
    %v1857 = vmul.f32 %v1827, %v306
    %v1858 = vmul.f32 %v1829, %v306
    %v1859 = vmul.f32 %v1831, %v306
    %v1860 = vmul.f32 %v1833, %v306
    %v1861 = vmul.f32 %v1835, %v306
    %v1862 = vmul.f32 %v1837, %v306
    %v1863 = vmul.f32 %v1839, %v306
    %v1864 = vmul.f32 %v1841, %v306
    %v1865 = vmul.f32 %v1843, %v306
    %v1866 = vmul.f32 %v1845, %v306
    %v1867 = vmul.f32 %v1847, %v306
    %v1868 = vmul.f32 %v1849, %v306
    %v1869 = vmul.f32 %v1851, %v306
    %v1870 = vmul.f32 %v1853, %v306
    %v1871 = vmul.f32 %v1855, %v306
    %v1872 = vsub.f32 %v1804, %v1856
    %v1873 = vsub.f32 %v1805, %v1857
    %v1874 = vsub.f32 %v1806, %v1858
    %v1875 = vsub.f32 %v1807, %v1859
    %v1876 = vsub.f32 %v1808, %v1860
    %v1877 = vsub.f32 %v1809, %v1861
    %v1878 = vsub.f32 %v1810, %v1862
    %v1879 = vsub.f32 %v1811, %v1863
    %v1880 = vsub.f32 %v1812, %v1864
    %v1881 = vsub.f32 %v1813, %v1865
    %v1882 = vsub.f32 %v1814, %v1866
    %v1883 = vsub.f32 %v1815, %v1867
    %v1884 = vsub.f32 %v1816, %v1868
    %v1885 = vsub.f32 %v1817, %v1869
    %v1886 = vsub.f32 %v1818, %v1870
    %v1887 = vsub.f32 %v1819, %v1871
    %v1888 = vmul.f32 %v1872, %v1872
    %v1889 = vmul.f32 %v1873, %v1873
    %v1890 = vmul.f32 %v1874, %v1874
    %v1891 = vmul.f32 %v1875, %v1875
    %v1892 = vmul.f32 %v1876, %v1876
    %v1893 = vmul.f32 %v1877, %v1877
    %v1894 = vmul.f32 %v1878, %v1878
    %v1895 = vmul.f32 %v1879, %v1879
    %v1896 = vmul.f32 %v1880, %v1880
    %v1897 = vmul.f32 %v1881, %v1881
    %v1898 = vmul.f32 %v1882, %v1882
    %v1899 = vmul.f32 %v1883, %v1883
    %v1900 = vmul.f32 %v1884, %v1884
    %v1901 = vmul.f32 %v1885, %v1885
    %v1902 = vmul.f32 %v1886, %v1886
    %v1903 = vmul.f32 %v1887, %v1887
    %1904 = vadd.xlane.f32.xlu0 %v1888
    %v1905 = vpop.xlane.xlu0 %1904
    %1906 = vadd.xlane.f32.xlu0 %v1889
    %v1907 = vpop.xlane.xlu0 %1906
    %1908 = vadd.xlane.f32.xlu0 %v1890
    %v1909 = vpop.xlane.xlu0 %1908
    %1910 = vadd.xlane.f32.xlu0 %v1891
    %v1911 = vpop.xlane.xlu0 %1910
    %1912 = vadd.xlane.f32.xlu0 %v1892
    %v1913 = vpop.xlane.xlu0 %1912
    %1914 = vadd.xlane.f32.xlu0 %v1893
    %v1915 = vpop.xlane.xlu0 %1914
    %1916 = vadd.xlane.f32.xlu0 %v1894
    %v1917 = vpop.xlane.xlu0 %1916
    %1918 = vadd.xlane.f32.xlu0 %v1895
    %v1919 = vpop.xlane.xlu0 %1918
    %1920 = vadd.xlane.f32.xlu0 %v1896
    %v1921 = vpop.xlane.xlu0 %1920
    %1922 = vadd.xlane.f32.xlu0 %v1897
    %v1923 = vpop.xlane.xlu0 %1922
    %1924 = vadd.xlane.f32.xlu0 %v1898
    %v1925 = vpop.xlane.xlu0 %1924
    %1926 = vadd.xlane.f32.xlu0 %v1899
    %v1927 = vpop.xlane.xlu0 %1926
    %1928 = vadd.xlane.f32.xlu0 %v1900
    %v1929 = vpop.xlane.xlu0 %1928
    %1930 = vadd.xlane.f32.xlu0 %v1901
    %v1931 = vpop.xlane.xlu0 %1930
    %1932 = vadd.xlane.f32.xlu0 %v1902
    %v1933 = vpop.xlane.xlu0 %1932
    %1934 = vadd.xlane.f32.xlu0 %v1903
    %v1935 = vpop.xlane.xlu0 %1934
    %v1936 = vmul.f32 %v1905, %v306
    %v1937 = vmul.f32 %v1907, %v306
    %v1938 = vmul.f32 %v1909, %v306
    %v1939 = vmul.f32 %v1911, %v306
    %v1940 = vmul.f32 %v1913, %v306
    %v1941 = vmul.f32 %v1915, %v306
    %v1942 = vmul.f32 %v1917, %v306
    %v1943 = vmul.f32 %v1919, %v306
    %v1944 = vmul.f32 %v1921, %v306
    %v1945 = vmul.f32 %v1923, %v306
    %v1946 = vmul.f32 %v1925, %v306
    %v1947 = vmul.f32 %v1927, %v306
    %v1948 = vmul.f32 %v1929, %v306
    %v1949 = vmul.f32 %v1931, %v306
    %v1950 = vmul.f32 %v1933, %v306
    %v1951 = vmul.f32 %v1935, %v306
    %v1952 = vadd.f32 %v1936, 1e-05
    %v1953 = vadd.f32 %v1937, 1e-05
    %v1954 = vadd.f32 %v1938, 1e-05
    %v1955 = vadd.f32 %v1939, 1e-05
    %v1956 = vadd.f32 %v1940, 1e-05
    %v1957 = vadd.f32 %v1941, 1e-05
    %v1958 = vadd.f32 %v1942, 1e-05
    %v1959 = vadd.f32 %v1943, 1e-05
    %v1960 = vadd.f32 %v1944, 1e-05
    %v1961 = vadd.f32 %v1945, 1e-05
    %v1962 = vadd.f32 %v1946, 1e-05
    %v1963 = vadd.f32 %v1947, 1e-05
    %v1964 = vadd.f32 %v1948, 1e-05
    %v1965 = vadd.f32 %v1949, 1e-05
    %v1966 = vadd.f32 %v1950, 1e-05
    %v1967 = vadd.f32 %v1951, 1e-05
    %v1968 = vrsqrt.pop %v1952
    %v1969 = vrsqrt.pop %v1953
    %v1970 = vrsqrt.pop %v1954
    %v1971 = vrsqrt.pop %v1955
    %v1972 = vrsqrt.pop %v1956
    %v1973 = vrsqrt.pop %v1957
    %v1974 = vrsqrt.pop %v1958
    %v1975 = vrsqrt.pop %v1959
    %v1976 = vrsqrt.pop %v1960
    %v1977 = vrsqrt.pop %v1961
    %v1978 = vrsqrt.pop %v1962
    %v1979 = vrsqrt.pop %v1963
    %v1980 = vrsqrt.pop %v1964
    %v1981 = vrsqrt.pop %v1965
    %v1982 = vrsqrt.pop %v1966
    %v1983 = vrsqrt.pop %v1967
    %v1984 = vmul.f32 %v1872, %v1968
    %v1985 = vmul.f32 %v1873, %v1969
    %v1986 = vmul.f32 %v1874, %v1970
    %v1987 = vmul.f32 %v1875, %v1971
    %v1988 = vmul.f32 %v1876, %v1972
    %v1989 = vmul.f32 %v1877, %v1973
    %v1990 = vmul.f32 %v1878, %v1974
    %v1991 = vmul.f32 %v1879, %v1975
    %v1992 = vmul.f32 %v1880, %v1976
    %v1993 = vmul.f32 %v1881, %v1977
    %v1994 = vmul.f32 %v1882, %v1978
    %v1995 = vmul.f32 %v1883, %v1979
    %v1996 = vmul.f32 %v1884, %v1980
    %v1997 = vmul.f32 %v1885, %v1981
    %v1998 = vmul.f32 %v1886, %v1982
    %v1999 = vmul.f32 %v1887, %v1983
    %v2001 = vlaneseq
    %v2002 = vshrl.u32 %v2001, 7
    %v2003 = vsub.s32 0, %v2002
    %v2004 = vrot.slane %v1821, %v2003
    %v2006 = vmul.f32 %v1984, %v2004
    %v2007 = vmul.f32 %v1985, %v2004
    %v2008 = vmul.f32 %v1986, %v2004
    %v2009 = vmul.f32 %v1987, %v2004
    %v2010 = vmul.f32 %v1988, %v2004
    %v2011 = vmul.f32 %v1989, %v2004
    %v2012 = vmul.f32 %v1990, %v2004
    %v2013 = vmul.f32 %v1991, %v2004
    %v2014 = vmul.f32 %v1992, %v2004
    %v2015 = vmul.f32 %v1993, %v2004
    %v2016 = vmul.f32 %v1994, %v2004
    %v2017 = vmul.f32 %v1995, %v2004
    %v2018 = vmul.f32 %v1996, %v2004
    %v2019 = vmul.f32 %v1997, %v2004
    %v2020 = vmul.f32 %v1998, %v2004
    %v2021 = vmul.f32 %v1999, %v2004
    %v2023 = vlaneseq
    %v2024 = vshrl.u32 %v2023, 7
    %v2025 = vsub.s32 0, %v2024
    %v2026 = vrot.slane %v1823, %v2025
    %v2028 = vadd.f32 %v2006, %v2026
    %v2029 = vadd.f32 %v2007, %v2026
    %v2030 = vadd.f32 %v2008, %v2026
    %v2031 = vadd.f32 %v2009, %v2026
    %v2032 = vadd.f32 %v2010, %v2026
    %v2033 = vadd.f32 %v2011, %v2026
    %v2034 = vadd.f32 %v2012, %v2026
    %v2035 = vadd.f32 %v2013, %v2026
    %v2036 = vadd.f32 %v2014, %v2026
    %v2037 = vadd.f32 %v2015, %v2026
    %v2038 = vadd.f32 %v2016, %v2026
    %v2039 = vadd.f32 %v2017, %v2026
    %v2040 = vadd.f32 %v2018, %v2026
    %v2041 = vadd.f32 %v2019, %v2026
    %v2042 = vadd.f32 %v2020, %v2026
    %v2043 = vadd.f32 %v2021, %v2026
    %s2044 = scalar_lea.vmem [#allocation8], 256
    %v2045 = vld [vmem:[%s2044] sm:$0xff]
    %v2046 = vld [vmem:[%s2044 + $0x8] sm:$0xff]
    %v2047 = vld [vmem:[%s2044 + $0x10] sm:$0xff]
    %v2048 = vld [vmem:[%s2044 + $0x18] sm:$0xff]
    %v2049 = vld [vmem:[%s2044 + $0x20] sm:$0xff]
    %v2050 = vld [vmem:[%s2044 + $0x28] sm:$0xff]
    %v2051 = vld [vmem:[%s2044 + $0x30] sm:$0xff]
    %v2052 = vld [vmem:[%s2044 + $0x38] sm:$0xff]
    %v2053 = vld [vmem:[%s2044 + $0x40] sm:$0xff]
    %v2054 = vld [vmem:[%s2044 + $0x48] sm:$0xff]
    %v2055 = vld [vmem:[%s2044 + $0x50] sm:$0xff]
    %v2056 = vld [vmem:[%s2044 + $0x58] sm:$0xff]
    %v2057 = vld [vmem:[%s2044 + $0x60] sm:$0xff]
    %v2058 = vld [vmem:[%s2044 + $0x68] sm:$0xff]
    %v2059 = vld [vmem:[%s2044 + $0x70] sm:$0xff]
    %v2060 = vld [vmem:[%s2044 + $0x78] sm:$0xff]
    %s2061 = scalar_lea.vmem %s6, 2
    %v2062 = vld [vmem:[%s2061] sm:$0x1]
    %v2064 = vlaneseq
    %v2065 = vshrl.u32 %v2064, 7
    %v2066 = vsub.s32 0, %v2065
    %v2067 = vrot.slane %v2062, %v2066
    %2069 = vmatprep.subr.mxu0 0.0
    %2070 = vmatpush1.msra.mxu0 %v2045
    %2071 = vmatprep.subr.mxu0 0.0
    %2072 = vmatpush1.msra.mxu0 %v2046
    %2073 = vmatprep.subr.mxu0 0.0
    %2074 = vmatpush1.msra.mxu0 %v2047
    %2075 = vmatprep.subr.mxu0 0.0
    %2076 = vmatpush1.msra.mxu0 %v2048
    %2077 = vmatprep.subr.mxu0 0.0
    %2078 = vmatpush1.msra.mxu0 %v2049
    %2079 = vmatprep.subr.mxu0 0.0
    %2080 = vmatpush1.msra.mxu0 %v2050
    %2081 = vmatprep.subr.mxu0 0.0
    %2082 = vmatpush1.msra.mxu0 %v2051
    %2083 = vmatprep.subr.mxu0 0.0
    %2084 = vmatpush1.msra.mxu0 %v2052
    %2085 = vmatprep.subr.mxu0 0.0
    %2086 = vmatpush1.msra.mxu0 %v2053
    %2087 = vmatprep.subr.mxu0 0.0
    %2088 = vmatpush1.msra.mxu0 %v2054
    %2089 = vmatprep.subr.mxu0 0.0
    %2090 = vmatpush1.msra.mxu0 %v2055
    %2091 = vmatprep.subr.mxu0 0.0
    %2092 = vmatpush1.msra.mxu0 %v2056
    %2093 = vmatprep.subr.mxu0 0.0
    %2094 = vmatpush1.msra.mxu0 %v2057
    %2095 = vmatprep.subr.mxu0 0.0
    %2096 = vmatpush1.msra.mxu0 %v2058
    %2097 = vmatprep.subr.mxu0 0.0
    %2098 = vmatpush1.msra.mxu0 %v2059
    %2099 = vmatprep.subr.mxu0 0.0
    %2100 = vmatpush1.msra.mxu0 %v2060
    %2101 = vmatprep.subr.mxu0 0.0
    %2102 = vmatpush1.msra.mxu0 0.0
    %2103 = vmatprep.subr.mxu0 0.0
    %2104 = vmatpush1.msra.mxu0 0.0
    %2105 = vmatprep.subr.mxu0 0.0
    %2106 = vmatpush1.msra.mxu0 0.0
    %2107 = vmatprep.subr.mxu0 0.0
    %2108 = vmatpush1.msra.mxu0 0.0
    %2109 = vmatprep.subr.mxu0 0.0
    %2110 = vmatpush1.msra.mxu0 0.0
    %2111 = vmatprep.subr.mxu0 0.0
    %2112 = vmatpush1.msra.mxu0 0.0
    %2113 = vmatprep.subr.mxu0 0.0
    %2114 = vmatpush1.msra.mxu0 0.0
    %2115 = vmatprep.subr.mxu0 0.0
    %2116 = vmatpush1.msra.mxu0 0.0
    %2117 = vmatprep.subr.mxu0 0.0
    %2118 = vmatpush1.msra.mxu0 0.0
    %2119 = vmatprep.subr.mxu0 0.0
    %2120 = vmatpush1.msra.mxu0 0.0
    %2121 = vmatprep.subr.mxu0 0.0
    %2122 = vmatpush1.msra.mxu0 0.0
    %2123 = vmatprep.subr.mxu0 0.0
    %2124 = vmatpush1.msra.mxu0 0.0
    %2125 = vmatprep.subr.mxu0 0.0
    %2126 = vmatpush1.msra.mxu0 0.0
    %2127 = vmatprep.subr.mxu0 0.0
    %2128 = vmatpush1.msra.mxu0 0.0
    %2129 = vmatprep.subr.mxu0 0.0
    %2130 = vmatpush1.msra.mxu0 0.0
    %2131 = vmatprep.subr.mxu0 0.0
    %2132 = vmatpush1.msra.mxu0 0.0
    %2133 = vmatprep.mubr.f32.mxu0 0.0
    %2134 = vmatmul.mubr.f32.gmra.mrb[0].mxu0 %v2028
    %v2135 = vpop.f32.mrb[0].mxu0
    %v2136 = vadd.f32 %v2067, %v2135
    %v2137 = vpop.f32.mrb[0].mxu0
    %2138 = vmatprep.mubr.f32.mxu0 0.0
    %2139 = vmatmul.mubr.f32.gmra.mrb[0].mxu0 %v2029
    %v2140 = vpop.f32.mrb[0].mxu0
    %v2141 = vadd.f32 %v2067, %v2140
    %v2142 = vpop.f32.mrb[0].mxu0
    %2143 = vmatprep.mubr.f32.mxu0 0.0
    %2144 = vmatmul.mubr.f32.gmra.mrb[0].mxu0 %v2030
    %v2145 = vpop.f32.mrb[0].mxu0
    %v2146 = vadd.f32 %v2067, %v2145
    %v2147 = vpop.f32.mrb[0].mxu0
    %2148 = vmatprep.mubr.f32.mxu0 0.0
    %2149 = vmatmul.mubr.f32.gmra.mrb[0].mxu0 %v2031
    %v2150 = vpop.f32.mrb[0].mxu0
    %v2151 = vadd.f32 %v2067, %v2150
    %v2152 = vpop.f32.mrb[0].mxu0
    %2153 = vmatprep.mubr.f32.mxu0 0.0
    %2154 = vmatmul.mubr.f32.gmra.mrb[0].mxu0 %v2032
    %v2155 = vpop.f32.mrb[0].mxu0
    %v2156 = vadd.f32 %v2067, %v2155
    %v2157 = vpop.f32.mrb[0].mxu0
    %2158 = vmatprep.mubr.f32.mxu0 0.0
    %2159 = vmatmul.mubr.f32.gmra.mrb[0].mxu0 %v2033
    %v2160 = vpop.f32.mrb[0].mxu0
    %v2161 = vadd.f32 %v2067, %v2160
    %v2162 = vpop.f32.mrb[0].mxu0
    %2163 = vmatprep.mubr.f32.mxu0 0.0
    %2164 = vmatmul.mubr.f32.gmra.mrb[0].mxu0 %v2034
    %v2165 = vpop.f32.mrb[0].mxu0
    %v2166 = vadd.f32 %v2067, %v2165
    %v2167 = vpop.f32.mrb[0].mxu0
    %2168 = vmatprep.mubr.f32.mxu0 0.0
    %2169 = vmatmul.mubr.f32.gmra.mrb[0].mxu0 %v2035
    %v2170 = vpop.f32.mrb[0].mxu0
    %v2171 = vadd.f32 %v2067, %v2170
    %v2172 = vpop.f32.mrb[0].mxu0
    %2173 = vmatprep.mubr.f32.mxu0 0.0
    %2174 = vmatmul.mubr.f32.gmra.mrb[0].mxu0 %v2036
    %v2175 = vpop.f32.mrb[0].mxu0
    %v2176 = vadd.f32 %v2067, %v2175
    %v2177 = vpop.f32.mrb[0].mxu0
    %2178 = vmatprep.mubr.f32.mxu0 0.0
    %2179 = vmatmul.mubr.f32.gmra.mrb[0].mxu0 %v2037
    %v2180 = vpop.f32.mrb[0].mxu0
    %v2181 = vadd.f32 %v2067, %v2180
    %v2182 = vpop.f32.mrb[0].mxu0
    %2183 = vmatprep.mubr.f32.mxu0 0.0
    %2184 = vmatmul.mubr.f32.gmra.mrb[0].mxu0 %v2038
    %v2185 = vpop.f32.mrb[0].mxu0
    %v2186 = vadd.f32 %v2067, %v2185
    %v2187 = vpop.f32.mrb[0].mxu0
    %2188 = vmatprep.mubr.f32.mxu0 0.0
    %2189 = vmatmul.mubr.f32.gmra.mrb[0].mxu0 %v2039
    %v2190 = vpop.f32.mrb[0].mxu0
    %v2191 = vadd.f32 %v2067, %v2190
    %v2192 = vpop.f32.mrb[0].mxu0
    %2193 = vmatprep.mubr.f32.mxu0 0.0
    %2194 = vmatmul.mubr.f32.gmra.mrb[0].mxu0 %v2040
    %v2195 = vpop.f32.mrb[0].mxu0
    %v2196 = vadd.f32 %v2067, %v2195
    %v2197 = vpop.f32.mrb[0].mxu0
    %2198 = vmatprep.mubr.f32.mxu0 0.0
    %2199 = vmatmul.mubr.f32.gmra.mrb[0].mxu0 %v2041
    %v2200 = vpop.f32.mrb[0].mxu0
    %v2201 = vadd.f32 %v2067, %v2200
    %v2202 = vpop.f32.mrb[0].mxu0
    %2203 = vmatprep.mubr.f32.mxu0 0.0
    %2204 = vmatmul.mubr.f32.gmra.mrb[0].mxu0 %v2042
    %v2205 = vpop.f32.mrb[0].mxu0
    %v2206 = vadd.f32 %v2067, %v2205
    %v2207 = vpop.f32.mrb[0].mxu0
    %2208 = vmatprep.mubr.f32.mxu0 0.0
    %2209 = vmatmul.mubr.f32.gmra.mrb[0].mxu0 %v2043
    %v2210 = vpop.f32.mrb[0].mxu0
    %v2211 = vadd.f32 %v2067, %v2210
    %v2212 = vpop.f32.mrb[0].mxu0
    %2213 = vdwg.mxu0
    %s2214 = scalar_lea.vmem %s7, 2
    %v2215 = vld [vmem:[%s2214] sm:$0x1]
    %s2216 = scalar_lea.vmem %s8, 2
    %v2217 = vld [vmem:[%s2216] sm:$0x1]
    %2218 = vadd.xlane.f32.xlu0 %v2136
    %v2219 = vpop.xlane.xlu0 %2218
    %2220 = vadd.xlane.f32.xlu0 %v2141
    %v2221 = vpop.xlane.xlu0 %2220
    %2222 = vadd.xlane.f32.xlu0 %v2146
    %v2223 = vpop.xlane.xlu0 %2222
    %2224 = vadd.xlane.f32.xlu0 %v2151
    %v2225 = vpop.xlane.xlu0 %2224
    %2226 = vadd.xlane.f32.xlu0 %v2156
    %v2227 = vpop.xlane.xlu0 %2226
    %2228 = vadd.xlane.f32.xlu0 %v2161
    %v2229 = vpop.xlane.xlu0 %2228
    %2230 = vadd.xlane.f32.xlu0 %v2166
    %v2231 = vpop.xlane.xlu0 %2230
    %2232 = vadd.xlane.f32.xlu0 %v2171
    %v2233 = vpop.xlane.xlu0 %2232
    %2234 = vadd.xlane.f32.xlu0 %v2176
    %v2235 = vpop.xlane.xlu0 %2234
    %2236 = vadd.xlane.f32.xlu0 %v2181
    %v2237 = vpop.xlane.xlu0 %2236
    %2238 = vadd.xlane.f32.xlu0 %v2186
    %v2239 = vpop.xlane.xlu0 %2238
    %2240 = vadd.xlane.f32.xlu0 %v2191
    %v2241 = vpop.xlane.xlu0 %2240
    %2242 = vadd.xlane.f32.xlu0 %v2196
    %v2243 = vpop.xlane.xlu0 %2242
    %2244 = vadd.xlane.f32.xlu0 %v2201
    %v2245 = vpop.xlane.xlu0 %2244
    %2246 = vadd.xlane.f32.xlu0 %v2206
    %v2247 = vpop.xlane.xlu0 %2246
    %2248 = vadd.xlane.f32.xlu0 %v2211
    %v2249 = vpop.xlane.xlu0 %2248
    %v2250 = vmul.f32 %v2219, %v306
    %v2251 = vmul.f32 %v2221, %v306
    %v2252 = vmul.f32 %v2223, %v306
    %v2253 = vmul.f32 %v2225, %v306
    %v2254 = vmul.f32 %v2227, %v306
    %v2255 = vmul.f32 %v2229, %v306
    %v2256 = vmul.f32 %v2231, %v306
    %v2257 = vmul.f32 %v2233, %v306
    %v2258 = vmul.f32 %v2235, %v306
    %v2259 = vmul.f32 %v2237, %v306
    %v2260 = vmul.f32 %v2239, %v306
    %v2261 = vmul.f32 %v2241, %v306
    %v2262 = vmul.f32 %v2243, %v306
    %v2263 = vmul.f32 %v2245, %v306
    %v2264 = vmul.f32 %v2247, %v306
    %v2265 = vmul.f32 %v2249, %v306
    %v2266 = vsub.f32 %v2136, %v2250
    %v2267 = vsub.f32 %v2141, %v2251
    %v2268 = vsub.f32 %v2146, %v2252
    %v2269 = vsub.f32 %v2151, %v2253
    %v2270 = vsub.f32 %v2156, %v2254
    %v2271 = vsub.f32 %v2161, %v2255
    %v2272 = vsub.f32 %v2166, %v2256
    %v2273 = vsub.f32 %v2171, %v2257
    %v2274 = vsub.f32 %v2176, %v2258
    %v2275 = vsub.f32 %v2181, %v2259
    %v2276 = vsub.f32 %v2186, %v2260
    %v2277 = vsub.f32 %v2191, %v2261
    %v2278 = vsub.f32 %v2196, %v2262
    %v2279 = vsub.f32 %v2201, %v2263
    %v2280 = vsub.f32 %v2206, %v2264
    %v2281 = vsub.f32 %v2211, %v2265
    %v2282 = vmul.f32 %v2266, %v2266
    %v2283 = vmul.f32 %v2267, %v2267
    %v2284 = vmul.f32 %v2268, %v2268
    %v2285 = vmul.f32 %v2269, %v2269
    %v2286 = vmul.f32 %v2270, %v2270
    %v2287 = vmul.f32 %v2271, %v2271
    %v2288 = vmul.f32 %v2272, %v2272
    %v2289 = vmul.f32 %v2273, %v2273
    %v2290 = vmul.f32 %v2274, %v2274
    %v2291 = vmul.f32 %v2275, %v2275
    %v2292 = vmul.f32 %v2276, %v2276
    %v2293 = vmul.f32 %v2277, %v2277
    %v2294 = vmul.f32 %v2278, %v2278
    %v2295 = vmul.f32 %v2279, %v2279
    %v2296 = vmul.f32 %v2280, %v2280
    %v2297 = vmul.f32 %v2281, %v2281
    %2298 = vadd.xlane.f32.xlu0 %v2282
    %v2299 = vpop.xlane.xlu0 %2298
    %2300 = vadd.xlane.f32.xlu0 %v2283
    %v2301 = vpop.xlane.xlu0 %2300
    %2302 = vadd.xlane.f32.xlu0 %v2284
    %v2303 = vpop.xlane.xlu0 %2302
    %2304 = vadd.xlane.f32.xlu0 %v2285
    %v2305 = vpop.xlane.xlu0 %2304
    %2306 = vadd.xlane.f32.xlu0 %v2286
    %v2307 = vpop.xlane.xlu0 %2306
    %2308 = vadd.xlane.f32.xlu0 %v2287
    %v2309 = vpop.xlane.xlu0 %2308
    %2310 = vadd.xlane.f32.xlu0 %v2288
    %v2311 = vpop.xlane.xlu0 %2310
    %2312 = vadd.xlane.f32.xlu0 %v2289
    %v2313 = vpop.xlane.xlu0 %2312
    %2314 = vadd.xlane.f32.xlu0 %v2290
    %v2315 = vpop.xlane.xlu0 %2314
    %2316 = vadd.xlane.f32.xlu0 %v2291
    %v2317 = vpop.xlane.xlu0 %2316
    %2318 = vadd.xlane.f32.xlu0 %v2292
    %v2319 = vpop.xlane.xlu0 %2318
    %2320 = vadd.xlane.f32.xlu0 %v2293
    %v2321 = vpop.xlane.xlu0 %2320
    %2322 = vadd.xlane.f32.xlu0 %v2294
    %v2323 = vpop.xlane.xlu0 %2322
    %2324 = vadd.xlane.f32.xlu0 %v2295
    %v2325 = vpop.xlane.xlu0 %2324
    %2326 = vadd.xlane.f32.xlu0 %v2296
    %v2327 = vpop.xlane.xlu0 %2326
    %2328 = vadd.xlane.f32.xlu0 %v2297
    %v2329 = vpop.xlane.xlu0 %2328
    %v2330 = vmul.f32 %v2299, %v306
    %v2331 = vmul.f32 %v2301, %v306
    %v2332 = vmul.f32 %v2303, %v306
    %v2333 = vmul.f32 %v2305, %v306
    %v2334 = vmul.f32 %v2307, %v306
    %v2335 = vmul.f32 %v2309, %v306
    %v2336 = vmul.f32 %v2311, %v306
    %v2337 = vmul.f32 %v2313, %v306
    %v2338 = vmul.f32 %v2315, %v306
    %v2339 = vmul.f32 %v2317, %v306
    %v2340 = vmul.f32 %v2319, %v306
    %v2341 = vmul.f32 %v2321, %v306
    %v2342 = vmul.f32 %v2323, %v306
    %v2343 = vmul.f32 %v2325, %v306
    %v2344 = vmul.f32 %v2327, %v306
    %v2345 = vmul.f32 %v2329, %v306
    %v2346 = vadd.f32 %v2330, 1e-05
    %v2347 = vadd.f32 %v2331, 1e-05
    %v2348 = vadd.f32 %v2332, 1e-05
    %v2349 = vadd.f32 %v2333, 1e-05
    %v2350 = vadd.f32 %v2334, 1e-05
    %v2351 = vadd.f32 %v2335, 1e-05
    %v2352 = vadd.f32 %v2336, 1e-05
    %v2353 = vadd.f32 %v2337, 1e-05
    %v2354 = vadd.f32 %v2338, 1e-05
    %v2355 = vadd.f32 %v2339, 1e-05
    %v2356 = vadd.f32 %v2340, 1e-05
    %v2357 = vadd.f32 %v2341, 1e-05
    %v2358 = vadd.f32 %v2342, 1e-05
    %v2359 = vadd.f32 %v2343, 1e-05
    %v2360 = vadd.f32 %v2344, 1e-05
    %v2361 = vadd.f32 %v2345, 1e-05
    %v2362 = vrsqrt.pop %v2346
    %v2363 = vrsqrt.pop %v2347
    %v2364 = vrsqrt.pop %v2348
    %v2365 = vrsqrt.pop %v2349
    %v2366 = vrsqrt.pop %v2350
    %v2367 = vrsqrt.pop %v2351
    %v2368 = vrsqrt.pop %v2352
    %v2369 = vrsqrt.pop %v2353
    %v2370 = vrsqrt.pop %v2354
    %v2371 = vrsqrt.pop %v2355
    %v2372 = vrsqrt.pop %v2356
    %v2373 = vrsqrt.pop %v2357
    %v2374 = vrsqrt.pop %v2358
    %v2375 = vrsqrt.pop %v2359
    %v2376 = vrsqrt.pop %v2360
    %v2377 = vrsqrt.pop %v2361
    %v2378 = vmul.f32 %v2266, %v2362
    %v2379 = vmul.f32 %v2267, %v2363
    %v2380 = vmul.f32 %v2268, %v2364
    %v2381 = vmul.f32 %v2269, %v2365
    %v2382 = vmul.f32 %v2270, %v2366
    %v2383 = vmul.f32 %v2271, %v2367
    %v2384 = vmul.f32 %v2272, %v2368
    %v2385 = vmul.f32 %v2273, %v2369
    %v2386 = vmul.f32 %v2274, %v2370
    %v2387 = vmul.f32 %v2275, %v2371
    %v2388 = vmul.f32 %v2276, %v2372
    %v2389 = vmul.f32 %v2277, %v2373
    %v2390 = vmul.f32 %v2278, %v2374
    %v2391 = vmul.f32 %v2279, %v2375
    %v2392 = vmul.f32 %v2280, %v2376
    %v2393 = vmul.f32 %v2281, %v2377
    %v2395 = vlaneseq
    %v2396 = vshrl.u32 %v2395, 7
    %v2397 = vsub.s32 0, %v2396
    %v2398 = vrot.slane %v2215, %v2397
    %v2400 = vmul.f32 %v2378, %v2398
    %v2401 = vmul.f32 %v2379, %v2398
    %v2402 = vmul.f32 %v2380, %v2398
    %v2403 = vmul.f32 %v2381, %v2398
    %v2404 = vmul.f32 %v2382, %v2398
    %v2405 = vmul.f32 %v2383, %v2398
    %v2406 = vmul.f32 %v2384, %v2398
    %v2407 = vmul.f32 %v2385, %v2398
    %v2408 = vmul.f32 %v2386, %v2398
    %v2409 = vmul.f32 %v2387, %v2398
    %v2410 = vmul.f32 %v2388, %v2398
    %v2411 = vmul.f32 %v2389, %v2398
    %v2412 = vmul.f32 %v2390, %v2398
    %v2413 = vmul.f32 %v2391, %v2398
    %v2414 = vmul.f32 %v2392, %v2398
    %v2415 = vmul.f32 %v2393, %v2398
    %v2417 = vlaneseq
    %v2418 = vshrl.u32 %v2417, 7
    %v2419 = vsub.s32 0, %v2418
    %v2420 = vrot.slane %v2217, %v2419
    %v2422 = vadd.f32 %v2400, %v2420
    %v2423 = vadd.f32 %v2401, %v2420
    %v2424 = vadd.f32 %v2402, %v2420
    %v2425 = vadd.f32 %v2403, %v2420
    %v2426 = vadd.f32 %v2404, %v2420
    %v2427 = vadd.f32 %v2405, %v2420
    %v2428 = vadd.f32 %v2406, %v2420
    %v2429 = vadd.f32 %v2407, %v2420
    %v2430 = vadd.f32 %v2408, %v2420
    %v2431 = vadd.f32 %v2409, %v2420
    %v2432 = vadd.f32 %v2410, %v2420
    %v2433 = vadd.f32 %v2411, %v2420
    %v2434 = vadd.f32 %v2412, %v2420
    %v2435 = vadd.f32 %v2413, %v2420
    %v2436 = vadd.f32 %v2414, %v2420
    %v2437 = vadd.f32 %v2415, %v2420
    %v2438 = vmax.f32 %v2422, 0.0
    %v2439 = vmax.f32 %v2423, 0.0
    %v2440 = vmax.f32 %v2424, 0.0
    %v2441 = vmax.f32 %v2425, 0.0
    %v2442 = vmax.f32 %v2426, 0.0
    %v2443 = vmax.f32 %v2427, 0.0
    %v2444 = vmax.f32 %v2428, 0.0
    %v2445 = vmax.f32 %v2429, 0.0
    %v2446 = vmax.f32 %v2430, 0.0
    %v2447 = vmax.f32 %v2431, 0.0
    %v2448 = vmax.f32 %v2432, 0.0
    %v2449 = vmax.f32 %v2433, 0.0
    %v2450 = vmax.f32 %v2434, 0.0
    %v2451 = vmax.f32 %v2435, 0.0
    %v2452 = vmax.f32 %v2436, 0.0
    %v2453 = vmax.f32 %v2437, 0.0
    %v2454 = vadd.f32 %v1481, %v2438
    %v2455 = vadd.f32 %v1482, %v2439
    %v2456 = vadd.f32 %v1483, %v2440
    %v2457 = vadd.f32 %v1484, %v2441
    %v2458 = vadd.f32 %v1485, %v2442
    %v2459 = vadd.f32 %v1486, %v2443
    %v2460 = vadd.f32 %v1487, %v2444
    %v2461 = vadd.f32 %v1488, %v2445
    %v2462 = vadd.f32 %v1489, %v2446
    %v2463 = vadd.f32 %v1490, %v2447
    %v2464 = vadd.f32 %v1491, %v2448
    %v2465 = vadd.f32 %v1492, %v2449
    %v2466 = vadd.f32 %v1493, %v2450
    %v2467 = vadd.f32 %v1494, %v2451
    %v2468 = vadd.f32 %v1495, %v2452
    %v2469 = vadd.f32 %v1496, %v2453
    %2470 = vst [vmem:[#allocation10] sm:$0xff] %v2454
    %2471 = vst [vmem:[#allocation10 + $0x8] sm:$0xff] %v2455
    %2472 = vst [vmem:[#allocation10 + $0x10] sm:$0xff] %v2456
    %2473 = vst [vmem:[#allocation10 + $0x18] sm:$0xff] %v2457
    %2474 = vst [vmem:[#allocation10 + $0x20] sm:$0xff] %v2458
    %2475 = vst [vmem:[#allocation10 + $0x28] sm:$0xff] %v2459
    %2476 = vst [vmem:[#allocation10 + $0x30] sm:$0xff] %v2460
    %2477 = vst [vmem:[#allocation10 + $0x38] sm:$0xff] %v2461
    %2478 = vst [vmem:[#allocation10 + $0x40] sm:$0xff] %v2462
    %2479 = vst [vmem:[#allocation10 + $0x48] sm:$0xff] %v2463
    %2480 = vst [vmem:[#allocation10 + $0x50] sm:$0xff] %v2464
    %2481 = vst [vmem:[#allocation10 + $0x58] sm:$0xff] %v2465
    %2482 = vst [vmem:[#allocation10 + $0x60] sm:$0xff] %v2466
    %2483 = vst [vmem:[#allocation10 + $0x68] sm:$0xff] %v2467
    %2484 = vst [vmem:[#allocation10 + $0x70] sm:$0xff] %v2468
    %2485 = vst [vmem:[#allocation10 + $0x78] sm:$0xff] %v2469
    // Predicated region
    $region54: #{tpu_custom_call.1} parent=1 // pred_check
      _
    $region55: #{tpu_custom_call.1} parent=1 // pred_check_branch
      %2487 = sbr.rel (0) target = $region57
    $region56: #{tpu_custom_call.1} parent=1 // pred_region
      %s2489 = ssub.s32 2048, 2048
      %2490 = vsyncadd [#allocation4], %s2489
      %s2491 = sshll.u32 [#allocation10], 4
      %s2492 = int_to_ptr.vmem [resolvable:$true] %s2491
      %2497 = dma.vmem_to_hbm [thread:$0]  %s2492, 2048, %s9, [#allocation4], 128, 128, 8
    $region57: #{tpu_custom_call.1} parent=1 // pred_fallthru
      _
    // Predicated region
    $region58: #{tpu_custom_call.1} parent=1 // pred_check
      _
    $region59: #{tpu_custom_call.1} parent=1 // pred_check_branch
      %2499 = sbr.rel (0) target = $region61
    $region60: #{tpu_custom_call.1} parent=1 // pred_region
      %2500 = dma.done [#allocation4], 2048
    $region61: #{tpu_custom_call.1} parent=1 // pred_fallthru
      _
    %2501 = vsyncpa [#allocation3], 1
    %2502 = vsyncpa [#allocation6], 1
    %2503 = vsyncpa [#allocation9], 1
    %2504 = vsyncpa [#allocation4], 1

</llo_original>
